<compile_context>
chip_gen: v6e
topology: v6e:2x2x1
jax: 0.10.0
libtpu: 0.0.40
codegen_flags: <defaults>
</compile_context>

<pallas_src>
import jax
import jax.numpy as jnp
from jax.experimental import pallas as pl
from jax.experimental.pallas import tpu as pltpu

B = 2                 # batch
SEQ = 8               # PROB_SEQ_LENGTH
EMB = 16              # EMBEDDING_DIM_PROB
NHEAD = 4
DMODEL = 64
HDIM = DMODEL // NHEAD          # 16
BL = B * SEQ                    # 16
HSTK = NHEAD * BL               # 64 (heads stacked along sublanes)
BN_EPS = 1e-5

# ----------------------------------------------------------------------------
# Parameter slab: one tightly packed, lane-dense (472, 128) f32 array.
# 64-wide matrices are co-located side-by-side; every block start is
# sublane-aligned (row offset % 8 == 0) with static lane offsets.
# ----------------------------------------------------------------------------
SLAB_COLS = 128
_LAYOUT = {
    # name: (row0, col0, nrows, ncols)
    "c3w":   (0,   0,  3 * 64, 64),       # conv3 im2col weight (tap-major, BN-scaled)
    "wmid":  (0,   64, 128,    64),       # decoder mid
    "wo":    (128, 64, 64,     64),       # attention out-proj
    "c2w":   (192, 0,  3 * 32, 64),       # conv2 im2col weight (tap-major, BN-scaled)
    "abias": (192, 64, HSTK,   HSTK),     # precomputed block-diag attention bias
    "wqk":   (288, 0,  DMODEL, 2 * DMODEL),  # fused q|k in-proj (q pre-scaled)
    "wv":    (352, 0,  DMODEL, DMODEL),   # v in-proj
    "wmulv": (352, 64, DMODEL, 2 * EMB),  # fc_mu | fc_logvar fused
    "wfin":  (352, 96, DMODEL, SEQ),      # decoder final
    "wex":   (416, 0,  EMB,    128),      # decoder expand
    "c1w":   (432, 0,  3,      32),       # conv1 taps (prev, cur, next), BN-scaled
    "b1":    (440, 0,  1, 32),
    "b2":    (441, 0,  1, 64),
    "b3":    (442, 0,  1, 64),
    "bqk":   (443, 0,  1, 2 * DMODEL),
    "bv":    (444, 0,  1, DMODEL),
    "bo":    (445, 0,  1, DMODEL),
    "bmulv": (446, 0,  1, 2 * EMB),
    "bex":   (447, 0,  1, 128),
    "bmid":  (448, 0,  1, 64),
    "bfin":  (449, 0,  1, SEQ),
    "kmask": (456, 0,  BL, 2),            # col 0: keep-prev, col 1: keep-next
}
SLAB_ROWS = 472                           # 472 x 128 x 4B ~= 236 KB

# packed input layout: one lane-dense (BL, 128) slab
IN_COLS = 128
EPS_COL = 64                              # eps lives at rows 0..B-1, cols 64..79

# packed output layout: one lane-dense (B, 128) slab
OUT_COLS = 128
_O_RECON = 0
_O_Z = SEQ                    # 8
_O_MULV = SEQ + EMB           # 24  (mu: 24..39, logvar: 40..55)
_O_KL = SEQ + 3 * EMB         # 56


def _blk(slab, name):
    r, c, nr, nc = _LAYOUT[name]
    return slab[r:r + nr, c:c + nc]


def _seq_shift(h, direction, keep):
    """Shift rows of (BL, C) by one sequence position; `keep` is a (BL, 1) 0/1
    float mask zeroing rows where the shift crosses a sequence boundary."""
    zero_row = jnp.zeros((1, h.shape[1]), h.dtype)
    if direction > 0:     # previous element: out[l] = h[l-1]
        shifted = jnp.concatenate([zero_row, h[:-1, :]], axis=0)
    else:                 # next element: out[l] = h[l+1]
        shifted = jnp.concatenate([h[1:, :], zero_row], axis=0)
    return shifted * keep


def _stack_heads(a):      # (BL, NHEAD*HDIM) -> (NHEAD*BL, HDIM)
    return jnp.concatenate(
        [a[:, h * HDIM:(h + 1) * HDIM] for h in range(NHEAD)], axis=0)


def _unstack_heads(a):    # (NHEAD*BL, HDIM) -> (BL, NHEAD*HDIM)
    return jnp.concatenate(
        [a[h * BL:(h + 1) * BL, :] for h in range(NHEAD)], axis=1)


def _forward_math(xin, slab, *, in_kernel):
    """Shared math for the Pallas kernel (slab is a Ref) and the pure-JAX
    reference (slab is an array).  Returns the packed (B, 128) output slab."""
    f32 = jnp.float32

    def recip(v):  # approx EUP reciprocal only inside the softmax denominator
        return pl.reciprocal(v, approx=True) if in_kernel else 1.0 / v

    h0 = xin[:, 0:1]                                # (BL, 1) conv input
    eps = xin[0:B, EPS_COL:EPS_COL + EMB]           # (B, EMB) reparam noise

    kmask = _blk(slab, "kmask")                     # (BL, 2) precomputed keep masks
    kprev = kmask[:, 0:1]
    knext = kmask[:, 1:2]

    # ---- encoder: Conv1d(k=3, pad=1) + folded eval BatchNorm + ReLU (x3) ----
    # conv1 (Cin=1): broadcast multiplies on the VPU, BN scale folded into taps.
    c1 = _blk(slab, "c1w")                          # (3, 32): prev / cur / next taps
    h = (_seq_shift(h0, +1, kprev) * c1[0:1, :]
         + h0 * c1[1:2, :]
         + _seq_shift(h0, -1, knext) * c1[2:3, :]
         + _blk(slab, "b1"))
    h = jnp.maximum(h, 0.0)                         # (BL, 32)

    # conv2 / conv3: im2col -> single wide matmul per layer.
    def conv_im2col(h, wname, bname):
        im = jnp.concatenate(
            [_seq_shift(h, +1, kprev), h, _seq_shift(h, -1, knext)], axis=1)
        y = jnp.dot(im, _blk(slab, wname), preferred_element_type=f32)
        return jnp.maximum(y + _blk(slab, bname), 0.0)

    h = conv_im2col(h, "c2w", "b2")                 # (BL, 64)
    h = conv_im2col(h, "c3w", "b3")                 # (BL, 64)

    # ---- MultiheadAttention(64, 4 heads, batch_first), self attention ----
    # Fused q|k projection + v projection; 1/sqrt(HDIM) folded into q weights.
    qk = (jnp.dot(h, _blk(slab, "wqk"), preferred_element_type=f32)
          + _blk(slab, "bqk"))                      # (BL, 128)
    v = (jnp.dot(h, _blk(slab, "wv"), preferred_element_type=f32)
         + _blk(slab, "bv"))                        # (BL, 64)
    q = qk[:, 0:DMODEL]
    k = qk[:, DMODEL:2 * DMODEL]

    # Stack heads along sublanes -> ONE block-diagonal score matmul, ONE
    # softmax, ONE context matmul.  The precomputed (64,64) bias masks both
    # cross-head and cross-batch terms (stacked index // SEQ == (head, batch)).
    q_s = _stack_heads(q)                           # (64, 16)
    k_s = _stack_heads(k)
    v_s = _stack_heads(v)
    s = (jnp.dot(q_s, k_s.T, preferred_element_type=f32)
         + _blk(slab, "abias"))                     # (64, 64)
    p = jnp.exp(s - jnp.max(s, axis=-1, keepdims=True))
    p = p * recip(jnp.sum(p, axis=-1, keepdims=True))
    ctx = _unstack_heads(jnp.dot(p, v_s, preferred_element_type=f32))  # (BL, 64)
    attn = (jnp.dot(ctx, _blk(slab, "wo"), preferred_element_type=f32)
            + _blk(slab, "bo"))                     # (BL, 64)

    # AdaptiveMaxPool1d(1) over the sequence axis, then flatten
    pooled = jnp.max(attn.reshape(B, SEQ, DMODEL), axis=1)   # (B, 64)

    # fused fc_mu | fc_logvar
    mulv = (jnp.dot(pooled, _blk(slab, "wmulv"), preferred_element_type=f32)
            + _blk(slab, "bmulv"))                  # (B, 32)
    mu = mulv[:, 0:EMB]
    logvar = mulv[:, EMB:2 * EMB]

    # reparameterize (eps supplied externally) + KL (std*std == exp(logvar))
    std = jnp.exp(0.5 * logvar)
    z = mu + eps * std
    kl = -0.5 * jnp.sum(1.0 + logvar - mu * mu - std * std, axis=1, keepdims=True)

    # ---- decoder ----
    d = jnp.maximum(jnp.dot(z, _blk(slab, "wex"), preferred_element_type=f32)
                    + _blk(slab, "bex"), 0.0)       # (B, 128)
    d = jnp.maximum(jnp.dot(d, _blk(slab, "wmid"), preferred_element_type=f32)
                    + _blk(slab, "bmid"), 0.0)      # (B, 64)
    logits = (jnp.dot(d, _blk(slab, "wfin"), preferred_element_type=f32)
              + _blk(slab, "bfin"))                 # (B, SEQ)
    recon = 1.0 / (1.0 + jnp.exp(-logits))          # EXACT sigmoid for the output

    pad = jnp.zeros((B, OUT_COLS - (_O_KL + 1)), f32)
    return jnp.concatenate([recon, z, mulv, kl, pad], axis=1)  # (B, 128)


def _prob_ae_kernel(xin_ref, slab_ref, out_ref):
    packed = _forward_math(xin_ref[...], slab_ref, in_kernel=True)
    out_ref[...] = packed.astype(out_ref.dtype)


def _pack_inputs(x, eps):
    xin = jnp.zeros((BL, IN_COLS), jnp.float32)
    xin = xin.at[:, 0].set(x.reshape(BL).astype(jnp.float32))
    xin = xin.at[0:B, EPS_COL:EPS_COL + EMB].set(eps.astype(jnp.float32))
    return xin


def _unpack(packed):
    recon = packed[:, _O_RECON:_O_RECON + SEQ]
    z = packed[:, _O_Z:_O_Z + EMB]
    mu = packed[:, _O_MULV:_O_MULV + EMB]
    logvar = packed[:, _O_MULV + EMB:_O_MULV + 2 * EMB]
    kl = packed[:, _O_KL]
    return recon, z, mu, logvar, kl


@jax.jit
def prob_autoencoder_forward(x, eps, slab):
    vmem = pl.BlockSpec(memory_space=pltpu.MemorySpace.VMEM)
    xin = _pack_inputs(x, eps)
    packed = pl.pallas_call(
        _prob_ae_kernel,
        out_shape=jax.ShapeDtypeStruct((B, OUT_COLS), jnp.float32),
        in_specs=[vmem, vmem],
        out_specs=vmem,
    )(xin, slab)
    return _unpack(packed)


def reference_forward(x, eps, slab):
    return _unpack(_forward_math(_pack_inputs(x, eps), slab, in_kernel=False))


# ----------------------------------------------------------------------------
# Parameter construction (PyTorch-native layouts) and packing/folding.
# ----------------------------------------------------------------------------
def init_raw_params(key):
    ks = jax.random.split(key, 23)

    def rnd(k, shape, scale=0.1):
        return (scale * jax.random.normal(k, shape)).astype(jnp.float32)

    def bn(k, c):
        kg, kb, km, kv = jax.random.split(k, 4)
        return dict(
            gamma=(1.0 + 0.1 * jax.random.normal(kg, (c,))).astype(jnp.float32),
            beta=(0.1 * jax.random.normal(kb, (c,))).astype(jnp.float32),
            mean=(0.1 * jax.random.normal(km, (c,))).astype(jnp.float32),
            var=(1.0 + 0.1 * jax.random.uniform(kv, (c,))).astype(jnp.float32))

    return {
        "conv1_w": rnd(ks[0], (32, 1, 3)), "conv1_b": rnd(ks[1], (32,)),
        "conv2_w": rnd(ks[2], (64, 32, 3)), "conv2_b": rnd(ks[3], (64,)),
        "conv3_w": rnd(ks[4], (64, 64, 3)), "conv3_b": rnd(ks[5], (64,)),
        "bn1": bn(ks[6], 32), "bn2": bn(ks[7], 64), "bn3": bn(ks[8], 64),
        "attn_in_w": rnd(ks[9], (3 * DMODEL, DMODEL)),     # in_proj_weight
        "attn_in_b": rnd(ks[10], (3 * DMODEL,)),
        "attn_out_w": rnd(ks[11], (DMODEL, DMODEL)),
        "attn_out_b": rnd(ks[12], (DMODEL,)),
        "fc_mu_w": rnd(ks[13], (EMB, DMODEL)), "fc_mu_b": rnd(ks[14], (EMB,)),
        "fc_lv_w": rnd(ks[15], (EMB, DMODEL)), "fc_lv_b": rnd(ks[16], (EMB,)),
        "fc_ex_w": rnd(ks[17], (128, EMB)), "fc_ex_b": rnd(ks[18], (128,)),
        "fc_mid_w": rnd(ks[19], (64, 128)), "fc_mid_b": rnd(ks[20], (64,)),
        "fc_fin_w": rnd(ks[21], (SEQ, 64)), "fc_fin_b": rnd(ks[22], (SEQ,)),
    }


def pack_params(p):
    """Fold eval BatchNorm + conv bias + attention scale into the weights,
    transpose Linear weights to (in, out), precompute the attention mask and
    boundary keep-masks, and pack everything into one dense f32 slab."""
    f32 = jnp.float32
    vals = {}

    def put(name, v):
        r, c, nr, nc = _LAYOUT[name]
        vals[name] = jnp.asarray(v, f32).reshape(nr, nc)

    def bn_fold(bn):                         # eval BN: y = s * x + t
        s = bn["gamma"] / jnp.sqrt(bn["var"] + BN_EPS)
        return s, bn["beta"] - bn["mean"] * s

    # conv + BN:  s*(W*x + b) + t  ==  (s*W)*x + (s*b + t)
    s1, t1 = bn_fold(p["bn1"])
    put("c1w", jnp.transpose(p["conv1_w"][:, 0, :]) * s1[None, :])      # (3, 32)
    put("b1", s1 * p["conv1_b"] + t1)

    def im2col_w(w, s):   # torch (Cout, Cin, 3) -> (3*Cin, Cout), tap-major
        return jnp.transpose(w, (2, 1, 0)).reshape(-1, w.shape[0]) * s[None, :]

    s2, t2 = bn_fold(p["bn2"])
    put("c2w", im2col_w(p["conv2_w"], s2)); put("b2", s2 * p["conv2_b"] + t2)
    s3, t3 = bn_fold(p["bn3"])
    put("c3w", im2col_w(p["conv3_w"], s3)); put("b3", s3 * p["conv3_b"] + t3)

    # attention: nn.Linear is y = x @ W.T + b -> store W.T; fold 1/sqrt(HDIM)
    # into the q half of the fused q|k in-projection.
    scale = 1.0 / (HDIM ** 0.5)
    w_in, b_in = p["attn_in_w"], p["attn_in_b"]
    put("wqk", jnp.concatenate([jnp.transpose(w_in[0:DMODEL]) * scale,
                                jnp.transpose(w_in[DMODEL:2 * DMODEL])], axis=1))
    put("bqk", jnp.concatenate([b_in[0:DMODEL] * scale,
                                b_in[DMODEL:2 * DMODEL]]))
    put("wv", jnp.transpose(w_in[2 * DMODEL:3 * DMODEL]))
    put("bv", b_in[2 * DMODEL:3 * DMODEL])
    put("wo", jnp.transpose(p["attn_out_w"])); put("bo", p["attn_out_b"])

    # fused fc_mu | fc_logvar
    put("wmulv", jnp.concatenate([jnp.transpose(p["fc_mu_w"]),
                                  jnp.transpose(p["fc_lv_w"])], axis=1))
    put("bmulv", jnp.concatenate([p["fc_mu_b"], p["fc_lv_b"]]))

    put("wex", jnp.transpose(p["fc_ex_w"]));   put("bex", p["fc_ex_b"])
    put("wmid", jnp.transpose(p["fc_mid_w"])); put("bmid", p["fc_mid_b"])
    put("wfin", jnp.transpose(p["fc_fin_w"])); put("bfin", p["fc_fin_b"])

    # precomputed block-diagonal attention bias: stacked index = head*BL +
    # batch*SEQ + pos, so (head, batch) == index // SEQ.
    blk = jnp.arange(HSTK) // SEQ
    put("abias", jnp.where(blk[:, None] == blk[None, :], 0.0, -1e30))

    # precomputed sequence-boundary keep masks for the conv shifts
    pos = jnp.arange(BL) % SEQ
    put("kmask", jnp.stack([(pos != 0).astype(f32),
                            (pos != SEQ - 1).astype(f32)], axis=1))

    slab = jnp.zeros((SLAB_ROWS, SLAB_COLS), f32)
    for name, v in vals.items():
        r, c, nr, nc = _LAYOUT[name]
        slab = slab.at[r:r + nr, c:c + nc].set(v)
    return slab


if __name__ == "__main__":
    key = jax.random.PRNGKey(0)
    kx, ke, kp = jax.random.split(key, 3)
    x = jax.random.uniform(kx, (B, SEQ), dtype=jnp.float32)     # probabilities
    eps = jax.random.normal(ke, (B, EMB), dtype=jnp.float32)    # reparam noise
    slab = pack_params(init_raw_params(kp))

    outs = jax.block_until_ready(prob_autoencoder_forward(x, eps, slab))
    refs = reference_forward(x, eps, slab)

    names = ["recon_x", "z", "mu", "logvar", "kl"]
    for name, o, r in zip(names, outs, refs):
        assert o.shape == r.shape and o.dtype == r.dtype, name
        err = float(jnp.max(jnp.abs(o - r)))
        # reference uses exact division; kernel uses approx EUP reciprocal in
        # the softmax denominator only (sigmoid is exact in both).
        assert err < 1e-2, f"{name} kernel/reference mismatch: {err}"

    print("KERNEL_OK")
</pallas_src>

<mosaic_0001>
module attributes {stable_mosaic.version = 11 : i64} {
  func.func @_prob_ae_kernel(%arg0: memref<16x128xf32, #tpu.memory_space<vmem>>, %arg1: memref<472x128xf32, #tpu.memory_space<vmem>>, %arg2: memref<2x128xf32, #tpu.memory_space<vmem>>) attributes {dimension_semantics = [], scalar_prefetch = 0 : i64, scratch_operands = 0 : i64, tpu.core_type = #tpu.core_type<tc>} {
    %c0 = arith.constant 0 : index
    %c0_0 = arith.constant 0 : index
    %0 = vector.load %arg0[%c0, %c0_0] : memref<16x128xf32, #tpu.memory_space<vmem>>, vector<16x128xf32>
    %1 = vector.extract_strided_slice %0 {offsets = [0, 0], sizes = [16, 1], strides = [1, 1]} : vector<16x128xf32> to vector<16x1xf32>
    %2 = vector.extract_strided_slice %0 {offsets = [0, 64], sizes = [2, 16], strides = [1, 1]} : vector<16x128xf32> to vector<2x16xf32>
    %c456 = arith.constant 456 : index
    %c0_1 = arith.constant 0 : index
    %3 = vector.load %arg1[%c456, %c0_1] : memref<472x128xf32, #tpu.memory_space<vmem>>, vector<16x2xf32>
    %4 = vector.extract_strided_slice %3 {offsets = [0, 0], sizes = [16, 1], strides = [1, 1]} : vector<16x2xf32> to vector<16x1xf32>
    %5 = vector.extract_strided_slice %3 {offsets = [0, 1], sizes = [16, 1], strides = [1, 1]} : vector<16x2xf32> to vector<16x1xf32>
    %c432 = arith.constant 432 : index
    %c0_2 = arith.constant 0 : index
    %6 = vector.load %arg1[%c432, %c0_2] : memref<472x128xf32, #tpu.memory_space<vmem>>, vector<3x32xf32>
    %cst = arith.constant 0.000000e+00 : f32
    %7 = vector.broadcast %cst : f32 to vector<1x1xf32>
    %8 = vector.extract_strided_slice %1 {offsets = [0, 0], sizes = [15, 1], strides = [1, 1]} : vector<16x1xf32> to vector<15x1xf32>
    %9 = tpu.concatenate %7, %8 in 0 : vector<1x1xf32>, vector<15x1xf32> -> vector<16x1xf32>
    %10 = arith.mulf %9, %4 : vector<16x1xf32>
    %11 = vector.extract_strided_slice %6 {offsets = [0, 0], sizes = [1, 32], strides = [1, 1]} : vector<3x32xf32> to vector<1x32xf32>
    %12 = vector.broadcast %10 : vector<16x1xf32> to vector<16x32xf32>
    %13 = vector.broadcast %11 : vector<1x32xf32> to vector<16x32xf32>
    %14 = arith.mulf %12, %13 : vector<16x32xf32>
    %15 = vector.extract_strided_slice %6 {offsets = [1, 0], sizes = [1, 32], strides = [1, 1]} : vector<3x32xf32> to vector<1x32xf32>
    %16 = vector.broadcast %1 : vector<16x1xf32> to vector<16x32xf32>
    %17 = vector.broadcast %15 : vector<1x32xf32> to vector<16x32xf32>
    %18 = arith.mulf %16, %17 : vector<16x32xf32>
    %19 = arith.addf %14, %18 : vector<16x32xf32>
    %cst_3 = arith.constant 0.000000e+00 : f32
    %20 = vector.broadcast %cst_3 : f32 to vector<1x1xf32>
    %21 = vector.extract_strided_slice %1 {offsets = [1, 0], sizes = [15, 1], strides = [1, 1]} : vector<16x1xf32> to vector<15x1xf32>
    %22 = tpu.concatenate %21, %20 in 0 : vector<15x1xf32>, vector<1x1xf32> -> vector<16x1xf32>
    %23 = arith.mulf %22, %5 : vector<16x1xf32>
    %24 = vector.extract_strided_slice %6 {offsets = [2, 0], sizes = [1, 32], strides = [1, 1]} : vector<3x32xf32> to vector<1x32xf32>
    %25 = vector.broadcast %23 : vector<16x1xf32> to vector<16x32xf32>
    %26 = vector.broadcast %24 : vector<1x32xf32> to vector<16x32xf32>
    %27 = arith.mulf %25, %26 : vector<16x32xf32>
    %28 = arith.addf %19, %27 : vector<16x32xf32>
    %c440 = arith.constant 440 : index
    %c0_4 = arith.constant 0 : index
    %29 = vector.load %arg1[%c440, %c0_4] : memref<472x128xf32, #tpu.memory_space<vmem>>, vector<1x32xf32>
    %30 = vector.broadcast %29 : vector<1x32xf32> to vector<16x32xf32>
    %31 = arith.addf %28, %30 : vector<16x32xf32>
    %cst_5 = arith.constant 0.000000e+00 : f32
    %32 = vector.broadcast %cst_5 : f32 to vector<16x32xf32>
    %33 = arith.maximumf %31, %32 : vector<16x32xf32>
    %cst_6 = arith.constant 0.000000e+00 : f32
    %34 = vector.broadcast %cst_6 : f32 to vector<1x32xf32>
    %35 = vector.extract_strided_slice %33 {offsets = [0, 0], sizes = [15, 32], strides = [1, 1]} : vector<16x32xf32> to vector<15x32xf32>
    %36 = tpu.concatenate %34, %35 in 0 : vector<1x32xf32>, vector<15x32xf32> -> vector<16x32xf32>
    %37 = vector.broadcast %4 : vector<16x1xf32> to vector<16x32xf32>
    %38 = arith.mulf %36, %37 : vector<16x32xf32>
    %cst_7 = arith.constant 0.000000e+00 : f32
    %39 = vector.broadcast %cst_7 : f32 to vector<1x32xf32>
    %40 = vector.extract_strided_slice %33 {offsets = [1, 0], sizes = [15, 32], strides = [1, 1]} : vector<16x32xf32> to vector<15x32xf32>
    %41 = tpu.concatenate %40, %39 in 0 : vector<15x32xf32>, vector<1x32xf32> -> vector<16x32xf32>
    %42 = vector.broadcast %5 : vector<16x1xf32> to vector<16x32xf32>
    %43 = arith.mulf %41, %42 : vector<16x32xf32>
    %44 = tpu.concatenate %38, %33, %43 in 1 : vector<16x32xf32>, vector<16x32xf32>, vector<16x32xf32> -> vector<16x96xf32>
    %c192 = arith.constant 192 : index
    %c0_8 = arith.constant 0 : index
    %45 = vector.load %arg1[%c192, %c0_8] : memref<472x128xf32, #tpu.memory_space<vmem>>, vector<96x64xf32>
    %cst_9 = arith.constant dense<0.000000e+00> : vector<16x64xf32>
    %46 = tpu.matmul %44, %45, %cst_9 {dimension_numbers = #tpu.dot_dimension_numbers<[1], [0], [0], [1], [0, 0, 1, 1], [], []>} : vector<16x96xf32>, vector<96x64xf32>, vector<16x64xf32> -> vector<16x64xf32>
    %c441 = arith.constant 441 : index
    %c0_10 = arith.constant 0 : index
    %47 = vector.load %arg1[%c441, %c0_10] : memref<472x128xf32, #tpu.memory_space<vmem>>, vector<1x64xf32>
    %48 = vector.broadcast %47 : vector<1x64xf32> to vector<16x64xf32>
    %49 = arith.addf %46, %48 : vector<16x64xf32>
    %cst_11 = arith.constant 0.000000e+00 : f32
    %50 = vector.broadcast %cst_11 : f32 to vector<16x64xf32>
    %51 = arith.maximumf %49, %50 : vector<16x64xf32>
    %cst_12 = arith.constant 0.000000e+00 : f32
    %52 = vector.broadcast %cst_12 : f32 to vector<1x64xf32>
    %53 = vector.extract_strided_slice %51 {offsets = [0, 0], sizes = [15, 64], strides = [1, 1]} : vector<16x64xf32> to vector<15x64xf32>
    %54 = tpu.concatenate %52, %53 in 0 : vector<1x64xf32>, vector<15x64xf32> -> vector<16x64xf32>
    %55 = vector.broadcast %4 : vector<16x1xf32> to vector<16x64xf32>
    %56 = arith.mulf %54, %55 : vector<16x64xf32>
    %cst_13 = arith.constant 0.000000e+00 : f32
    %57 = vector.broadcast %cst_13 : f32 to vector<1x64xf32>
    %58 = vector.extract_strided_slice %51 {offsets = [1, 0], sizes = [15, 64], strides = [1, 1]} : vector<16x64xf32> to vector<15x64xf32>
    %59 = tpu.concatenate %58, %57 in 0 : vector<15x64xf32>, vector<1x64xf32> -> vector<16x64xf32>
    %60 = vector.broadcast %5 : vector<16x1xf32> to vector<16x64xf32>
    %61 = arith.mulf %59, %60 : vector<16x64xf32>
    %62 = tpu.concatenate %56, %51, %61 in 1 : vector<16x64xf32>, vector<16x64xf32>, vector<16x64xf32> -> vector<16x192xf32>
    %c0_14 = arith.constant 0 : index
    %c0_15 = arith.constant 0 : index
    %63 = vector.load %arg1[%c0_14, %c0_15] : memref<472x128xf32, #tpu.memory_space<vmem>>, vector<192x64xf32>
    %cst_16 = arith.constant dense<0.000000e+00> : vector<16x64xf32>
    %64 = tpu.matmul %62, %63, %cst_16 {dimension_numbers = #tpu.dot_dimension_numbers<[1], [0], [0], [1], [0, 0, 1, 1], [], []>} : vector<16x192xf32>, vector<192x64xf32>, vector<16x64xf32> -> vector<16x64xf32>
    %c442 = arith.constant 442 : index
    %c0_17 = arith.constant 0 : index
    %65 = vector.load %arg1[%c442, %c0_17] : memref<472x128xf32, #tpu.memory_space<vmem>>, vector<1x64xf32>
    %66 = vector.broadcast %65 : vector<1x64xf32> to vector<16x64xf32>
    %67 = arith.addf %64, %66 : vector<16x64xf32>
    %cst_18 = arith.constant 0.000000e+00 : f32
    %68 = vector.broadcast %cst_18 : f32 to vector<16x64xf32>
    %69 = arith.maximumf %67, %68 : vector<16x64xf32>
    %c288 = arith.constant 288 : index
    %c0_19 = arith.constant 0 : index
    %70 = vector.load %arg1[%c288, %c0_19] : memref<472x128xf32, #tpu.memory_space<vmem>>, vector<64x128xf32>
    %cst_20 = arith.constant dense<0.000000e+00> : vector<16x128xf32>
    %71 = tpu.matmul %69, %70, %cst_20 {dimension_numbers = #tpu.dot_dimension_numbers<[1], [0], [0], [1], [0, 0, 1, 1], [], []>} : vector<16x64xf32>, vector<64x128xf32>, vector<16x128xf32> -> vector<16x128xf32>
    %c443 = arith.constant 443 : index
    %c0_21 = arith.constant 0 : index
    %72 = vector.load %arg1[%c443, %c0_21] : memref<472x128xf32, #tpu.memory_space<vmem>>, vector<1x128xf32>
    %73 = vector.broadcast %72 : vector<1x128xf32> to vector<16x128xf32>
    %74 = arith.addf %71, %73 : vector<16x128xf32>
    %c352 = arith.constant 352 : index
    %c0_22 = arith.constant 0 : index
    %75 = vector.load %arg1[%c352, %c0_22] : memref<472x128xf32, #tpu.memory_space<vmem>>, vector<64x64xf32>
    %cst_23 = arith.constant dense<0.000000e+00> : vector<16x64xf32>
    %76 = tpu.matmul %69, %75, %cst_23 {dimension_numbers = #tpu.dot_dimension_numbers<[1], [0], [0], [1], [0, 0, 1, 1], [], []>} : vector<16x64xf32>, vector<64x64xf32>, vector<16x64xf32> -> vector<16x64xf32>
    %c444 = arith.constant 444 : index
    %c0_24 = arith.constant 0 : index
    %77 = vector.load %arg1[%c444, %c0_24] : memref<472x128xf32, #tpu.memory_space<vmem>>, vector<1x64xf32>
    %78 = vector.broadcast %77 : vector<1x64xf32> to vector<16x64xf32>
    %79 = arith.addf %76, %78 : vector<16x64xf32>
    %80 = vector.extract_strided_slice %74 {offsets = [0, 0], sizes = [16, 64], strides = [1, 1]} : vector<16x128xf32> to vector<16x64xf32>
    %81 = vector.extract_strided_slice %74 {offsets = [0, 64], sizes = [16, 64], strides = [1, 1]} : vector<16x128xf32> to vector<16x64xf32>
    %82 = vector.extract_strided_slice %80 {offsets = [0, 0], sizes = [16, 16], strides = [1, 1]} : vector<16x64xf32> to vector<16x16xf32>
    %83 = vector.extract_strided_slice %80 {offsets = [0, 16], sizes = [16, 16], strides = [1, 1]} : vector<16x64xf32> to vector<16x16xf32>
    %84 = vector.extract_strided_slice %80 {offsets = [0, 32], sizes = [16, 16], strides = [1, 1]} : vector<16x64xf32> to vector<16x16xf32>
    %85 = vector.extract_strided_slice %80 {offsets = [0, 48], sizes = [16, 16], strides = [1, 1]} : vector<16x64xf32> to vector<16x16xf32>
    %86 = tpu.concatenate %82, %83, %84, %85 in 0 : vector<16x16xf32>, vector<16x16xf32>, vector<16x16xf32>, vector<16x16xf32> -> vector<64x16xf32>
    %87 = vector.extract_strided_slice %81 {offsets = [0, 0], sizes = [16, 16], strides = [1, 1]} : vector<16x64xf32> to vector<16x16xf32>
    %88 = vector.extract_strided_slice %81 {offsets = [0, 16], sizes = [16, 16], strides = [1, 1]} : vector<16x64xf32> to vector<16x16xf32>
    %89 = vector.extract_strided_slice %81 {offsets = [0, 32], sizes = [16, 16], strides = [1, 1]} : vector<16x64xf32> to vector<16x16xf32>
    %90 = vector.extract_strided_slice %81 {offsets = [0, 48], sizes = [16, 16], strides = [1, 1]} : vector<16x64xf32> to vector<16x16xf32>
    %91 = tpu.concatenate %87, %88, %89, %90 in 0 : vector<16x16xf32>, vector<16x16xf32>, vector<16x16xf32>, vector<16x16xf32> -> vector<64x16xf32>
    %92 = vector.extract_strided_slice %79 {offsets = [0, 0], sizes = [16, 16], strides = [1, 1]} : vector<16x64xf32> to vector<16x16xf32>
    %93 = vector.extract_strided_slice %79 {offsets = [0, 16], sizes = [16, 16], strides = [1, 1]} : vector<16x64xf32> to vector<16x16xf32>
    %94 = vector.extract_strided_slice %79 {offsets = [0, 32], sizes = [16, 16], strides = [1, 1]} : vector<16x64xf32> to vector<16x16xf32>
    %95 = vector.extract_strided_slice %79 {offsets = [0, 48], sizes = [16, 16], strides = [1, 1]} : vector<16x64xf32> to vector<16x16xf32>
    %96 = tpu.concatenate %92, %93, %94, %95 in 0 : vector<16x16xf32>, vector<16x16xf32>, vector<16x16xf32>, vector<16x16xf32> -> vector<64x16xf32>
    %97 = tpu.transpose %91, [1, 0] : vector<64x16xf32> -> vector<16x64xf32>
    %cst_25 = arith.constant dense<0.000000e+00> : vector<64x64xf32>
    %98 = tpu.matmul %86, %97, %cst_25 {dimension_numbers = #tpu.dot_dimension_numbers<[1], [0], [0], [1], [0, 0, 1, 1], [], []>} : vector<64x16xf32>, vector<16x64xf32>, vector<64x64xf32> -> vector<64x64xf32>
    %c192_26 = arith.constant 192 : index
    %c64 = arith.constant 64 : index
    %99 = vector.load %arg1[%c192_26, %c64] : memref<472x128xf32, #tpu.memory_space<vmem>>, vector<64x64xf32>
    %100 = arith.addf %98, %99 : vector<64x64xf32>
    %cst_27 = arith.constant dense<0xFF800000> : vector<64xf32>
    %101 = vector.multi_reduction <maximumf>, %100, %cst_27 [1] : vector<64x64xf32> to vector<64xf32>
    %102 = vector.shape_cast %101 : vector<64xf32> to vector<64x1xf32>
    %103 = vector.broadcast %102 : vector<64x1xf32> to vector<64x64xf32>
    %104 = arith.subf %100, %103 : vector<64x64xf32>
    %105 = math.exp %104 : vector<64x64xf32>
    %cst_28 = arith.constant dense<0.000000e+00> : vector<64xf32>
    %106 = vector.multi_reduction <add>, %105, %cst_28 [1] : vector<64x64xf32> to vector<64xf32>
    %107 = vector.shape_cast %106 : vector<64xf32> to vector<64x1xf32>
    %108 = tpu.reciprocal %107 {approx = true} : vector<64x1xf32> -> vector<64x1xf32>
    %109 = vector.broadcast %108 : vector<64x1xf32> to vector<64x64xf32>
    %110 = arith.mulf %105, %109 : vector<64x64xf32>
    %cst_29 = arith.constant dense<0.000000e+00> : vector<64x16xf32>
    %111 = tpu.matmul %110, %96, %cst_29 {dimension_numbers = #tpu.dot_dimension_numbers<[1], [0], [0], [1], [0, 0, 1, 1], [], []>} : vector<64x64xf32>, vector<64x16xf32>, vector<64x16xf32> -> vector<64x16xf32>
    %112 = vector.extract_strided_slice %111 {offsets = [0, 0], sizes = [16, 16], strides = [1, 1]} : vector<64x16xf32> to vector<16x16xf32>
    %113 = vector.extract_strided_slice %111 {offsets = [16, 0], sizes = [16, 16], strides = [1, 1]} : vector<64x16xf32> to vector<16x16xf32>
    %114 = vector.extract_strided_slice %111 {offsets = [32, 0], sizes = [16, 16], strides = [1, 1]} : vector<64x16xf32> to vector<16x16xf32>
    %115 = vector.extract_strided_slice %111 {offsets = [48, 0], sizes = [16, 16], strides = [1, 1]} : vector<64x16xf32> to vector<16x16xf32>
    %116 = tpu.concatenate %112, %113, %114, %115 in 1 : vector<16x16xf32>, vector<16x16xf32>, vector<16x16xf32>, vector<16x16xf32> -> vector<16x64xf32>
    %c128 = arith.constant 128 : index
    %c64_30 = arith.constant 64 : index
    %117 = vector.load %arg1[%c128, %c64_30] : memref<472x128xf32, #tpu.memory_space<vmem>>, vector<64x64xf32>
    %cst_31 = arith.constant dense<0.000000e+00> : vector<16x64xf32>
    %118 = tpu.matmul %116, %117, %cst_31 {dimension_numbers = #tpu.dot_dimension_numbers<[1], [0], [0], [1], [0, 0, 1, 1], [], []>} : vector<16x64xf32>, vector<64x64xf32>, vector<16x64xf32> -> vector<16x64xf32>
    %c445 = arith.constant 445 : index
    %c0_32 = arith.constant 0 : index
    %119 = vector.load %arg1[%c445, %c0_32] : memref<472x128xf32, #tpu.memory_space<vmem>>, vector<1x64xf32>
    %120 = vector.broadcast %119 : vector<1x64xf32> to vector<16x64xf32>
    %121 = arith.addf %118, %120 : vector<16x64xf32>
    %122 = vector.shape_cast %121 : vector<16x64xf32> to vector<2x8x64xf32>
    %cst_33 = arith.constant dense<0xFF800000> : vector<2x64xf32>
    %123 = vector.multi_reduction <maximumf>, %122, %cst_33 [1] : vector<2x8x64xf32> to vector<2x64xf32>
    %c352_34 = arith.constant 352 : index
    %c64_35 = arith.constant 64 : index
    %124 = vector.load %arg1[%c352_34, %c64_35] : memref<472x128xf32, #tpu.memory_space<vmem>>, vector<64x32xf32>
    %cst_36 = arith.constant dense<0.000000e+00> : vector<2x32xf32>
    %125 = tpu.matmul %123, %124, %cst_36 {dimension_numbers = #tpu.dot_dimension_numbers<[1], [0], [0], [1], [0, 0, 1, 1], [], []>} : vector<2x64xf32>, vector<64x32xf32>, vector<2x32xf32> -> vector<2x32xf32>
    %c446 = arith.constant 446 : index
    %c0_37 = arith.constant 0 : index
    %126 = vector.load %arg1[%c446, %c0_37] : memref<472x128xf32, #tpu.memory_space<vmem>>, vector<1x32xf32>
    %127 = vector.broadcast %126 : vector<1x32xf32> to vector<2x32xf32>
    %128 = arith.addf %125, %127 : vector<2x32xf32>
    %129 = vector.extract_strided_slice %128 {offsets = [0, 0], sizes = [2, 16], strides = [1, 1]} : vector<2x32xf32> to vector<2x16xf32>
    %130 = vector.extract_strided_slice %128 {offsets = [0, 16], sizes = [2, 16], strides = [1, 1]} : vector<2x32xf32> to vector<2x16xf32>
    %cst_38 = arith.constant 5.000000e-01 : f32
    %131 = vector.broadcast %cst_38 : f32 to vector<2x16xf32>
    %132 = arith.mulf %131, %130 : vector<2x16xf32>
    %133 = math.exp %132 : vector<2x16xf32>
    %134 = arith.mulf %2, %133 : vector<2x16xf32>
    %135 = arith.addf %129, %134 : vector<2x16xf32>
    %cst_39 = arith.constant 1.000000e+00 : f32
    %136 = vector.broadcast %cst_39 : f32 to vector<2x16xf32>
    %137 = arith.addf %136, %130 : vector<2x16xf32>
    %138 = arith.mulf %129, %129 : vector<2x16xf32>
    %139 = arith.subf %137, %138 : vector<2x16xf32>
    %140 = arith.mulf %133, %133 : vector<2x16xf32>
    %141 = arith.subf %139, %140 : vector<2x16xf32>
    %cst_40 = arith.constant dense<0.000000e+00> : vector<2xf32>
    %142 = vector.multi_reduction <add>, %141, %cst_40 [1] : vector<2x16xf32> to vector<2xf32>
    %143 = vector.shape_cast %142 : vector<2xf32> to vector<2x1xf32>
    %cst_41 = arith.constant -5.000000e-01 : f32
    %144 = vector.broadcast %cst_41 : f32 to vector<2x1xf32>
    %145 = arith.mulf %144, %143 : vector<2x1xf32>
    %c416 = arith.constant 416 : index
    %c0_42 = arith.constant 0 : index
    %146 = vector.load %arg1[%c416, %c0_42] : memref<472x128xf32, #tpu.memory_space<vmem>>, vector<16x128xf32>
    %cst_43 = arith.constant dense<0.000000e+00> : vector<2x128xf32>
    %147 = tpu.matmul %135, %146, %cst_43 {dimension_numbers = #tpu.dot_dimension_numbers<[1], [0], [0], [1], [0, 0, 1, 1], [], []>} : vector<2x16xf32>, vector<16x128xf32>, vector<2x128xf32> -> vector<2x128xf32>
    %c447 = arith.constant 447 : index
    %c0_44 = arith.constant 0 : index
    %148 = vector.load %arg1[%c447, %c0_44] : memref<472x128xf32, #tpu.memory_space<vmem>>, vector<1x128xf32>
    %149 = vector.broadcast %148 : vector<1x128xf32> to vector<2x128xf32>
    %150 = arith.addf %147, %149 : vector<2x128xf32>
    %cst_45 = arith.constant 0.000000e+00 : f32
    %151 = vector.broadcast %cst_45 : f32 to vector<2x128xf32>
    %152 = arith.maximumf %150, %151 : vector<2x128xf32>
    %c0_46 = arith.constant 0 : index
    %c64_47 = arith.constant 64 : index
    %153 = vector.load %arg1[%c0_46, %c64_47] : memref<472x128xf32, #tpu.memory_space<vmem>>, vector<128x64xf32>
    %cst_48 = arith.constant dense<0.000000e+00> : vector<2x64xf32>
    %154 = tpu.matmul %152, %153, %cst_48 {dimension_numbers = #tpu.dot_dimension_numbers<[1], [0], [0], [1], [0, 0, 1, 1], [], []>} : vector<2x128xf32>, vector<128x64xf32>, vector<2x64xf32> -> vector<2x64xf32>
    %c448 = arith.constant 448 : index
    %c0_49 = arith.constant 0 : index
    %155 = vector.load %arg1[%c448, %c0_49] : memref<472x128xf32, #tpu.memory_space<vmem>>, vector<1x64xf32>
    %156 = vector.broadcast %155 : vector<1x64xf32> to vector<2x64xf32>
    %157 = arith.addf %154, %156 : vector<2x64xf32>
    %cst_50 = arith.constant 0.000000e+00 : f32
    %158 = vector.broadcast %cst_50 : f32 to vector<2x64xf32>
    %159 = arith.maximumf %157, %158 : vector<2x64xf32>
    %c352_51 = arith.constant 352 : index
    %c96 = arith.constant 96 : index
    %160 = vector.load %arg1[%c352_51, %c96] : memref<472x128xf32, #tpu.memory_space<vmem>>, vector<64x8xf32>
    %cst_52 = arith.constant dense<0.000000e+00> : vector<2x8xf32>
    %161 = tpu.matmul %159, %160, %cst_52 {dimension_numbers = #tpu.dot_dimension_numbers<[1], [0], [0], [1], [0, 0, 1, 1], [], []>} : vector<2x64xf32>, vector<64x8xf32>, vector<2x8xf32> -> vector<2x8xf32>
    %c449 = arith.constant 449 : index
    %c0_53 = arith.constant 0 : index
    %162 = vector.load %arg1[%c449, %c0_53] : memref<472x128xf32, #tpu.memory_space<vmem>>, vector<1x8xf32>
    %163 = vector.broadcast %162 : vector<1x8xf32> to vector<2x8xf32>
    %164 = arith.addf %161, %163 : vector<2x8xf32>
    %cst_54 = arith.constant 0.000000e+00 : f32
    %165 = vector.broadcast %cst_54 : f32 to vector<2x8xf32>
    %166 = arith.subf %165, %164 : vector<2x8xf32>
    %167 = math.exp %166 : vector<2x8xf32>
    %cst_55 = arith.constant 1.000000e+00 : f32
    %168 = vector.broadcast %cst_55 : f32 to vector<2x8xf32>
    %169 = arith.addf %168, %167 : vector<2x8xf32>
    %cst_56 = arith.constant 1.000000e+00 : f32
    %170 = vector.broadcast %cst_56 : f32 to vector<2x8xf32>
    %171 = arith.divf %170, %169 : vector<2x8xf32>
    %cst_57 = arith.constant 0.000000e+00 : f32
    %172 = vector.broadcast %cst_57 : f32 to vector<2x71xf32>
    %173 = tpu.concatenate %171, %135, %128, %145, %172 in 1 : vector<2x8xf32>, vector<2x16xf32>, vector<2x32xf32>, vector<2x1xf32>, vector<2x71xf32> -> vector<2x128xf32>
    %c0_58 = arith.constant 0 : index
    %c0_59 = arith.constant 0 : index
    %174 = vector.load %arg2[%c0_58, %c0_59] : memref<2x128xf32, #tpu.memory_space<vmem>>, vector<2x128xf32>
    tpu.vector_store %arg2[%c0_58, %c0_59], %173 {strides = array<i32>} : memref<2x128xf32, #tpu.memory_space<vmem>>, vector<2x128xf32>,
    return
  }
}

</mosaic_0001>

<llo_original>
// kernel: prob_autoencoder_forward.1
$region0: #{prob_autoencoder_forward.1}
  #allocation0 [shape = 'u32[]', space=smem, size = 0x4, offset = 0x4, fixed_abs, tag = 'smem constant byte address 0x4 - core index']
  #allocation1 [shape = 'u32[144,128]{1,0:T(1,128)}', space=vmem, size = 0x12000, scoped, tag = 'internal scratch']
  %s0 = inlined_call_operand.vmem [shape: f32[16,128], index: 0, kind: input, shape index: {}]
  %s1 = inlined_call_operand.hbm [shape: f32[472,128], index: 1, kind: input, shape index: {}]
  %s2 = inlined_call_operand.vmem [shape: f32[2,128], index: 2, kind: output, shape index: {}]
  %s3 = sld [smem:[#allocation0]]
  $region22: #{prob_autoencoder_forward.1} parent=0
    _
  %s5 = ssub.s32 1, %s3
  %s6 = scalar_select 0, %s5, %s3
  $region1: #{prob_autoencoder_forward.1} parent=0
    #allocation2 [shape = 'u8[241664]{0}', space=vmem, size = 0x3b000, scoped, tag = 'input window, operand 1, single buffered']
    #allocation3 [shape = 's32[1]{0}', space=sflag, size = 0x4, scoped, tag = 'scoped memory for prob_autoencoder_forward.1']
    %7 = vsyncpa [#allocation3], 0
    // Predicated region
    $region2: #{prob_autoencoder_forward.1} parent=1 // pred_check
      _
    $region3: #{prob_autoencoder_forward.1} parent=1 // pred_check_branch
      %9 = sbr.rel (0) target = $region5
    $region4: #{prob_autoencoder_forward.1} parent=1 // pred_region
      _
    $region5: #{prob_autoencoder_forward.1} parent=1 // pred_fallthru
      _
    // Predicated region
    $region6: #{prob_autoencoder_forward.1} parent=1 // pred_check
      _
    $region7: #{prob_autoencoder_forward.1} parent=1 // pred_check_branch
      %11 = sbr.rel (0) target = $region9
    $region8: #{prob_autoencoder_forward.1} parent=1 // pred_region
      %s13 = ssub.s32 7552, 7552
      %14 = vsyncadd [#allocation3], %s13
      %s15 = sshll.u32 [#allocation2], 4
      %s16 = int_to_ptr.vmem [resolvable:$true] %s15
      %21 = dma.hbm_to_vmem [thread:$0]  %s1, 7552, %s16, [#allocation3], 128, 128, 8
    $region9: #{prob_autoencoder_forward.1} parent=1 // pred_fallthru
      _
    // Predicated region
    $region10: #{prob_autoencoder_forward.1} parent=1 // pred_check
      _
    $region11: #{prob_autoencoder_forward.1} parent=1 // pred_check_branch
      %23 = sbr.rel (0) target = $region13
    $region12: #{prob_autoencoder_forward.1} parent=1 // pred_region
      %24 = dma.done [#allocation3], 7552
    $region13: #{prob_autoencoder_forward.1} parent=1 // pred_fallthru
      _
    %v25 = vld [vmem:[%s0] sm:$0xff]
    %v26 = vld [vmem:[%s0 + $0x8] sm:$0xff]
    %v27 = vld [vmem:[#allocation2 + $0x1c8] sm:$0xff]
    %v28 = vld [vmem:[#allocation2 + $0x1d0] sm:$0xff]
    %v29 = vld [vmem:[#allocation2 + $0x1b0] sm:$0x7]
    %vm32 = vcmask 1040384
    %v33 = vrot.slane %v25, 7
    %v34 = vrot.slane %v26, 7
    %v35 = vsel %vm32, %v33, %v34
    %v38 = vsel %vm32, 0.0, %v33
    %v39 = vmul.f32 %v38, %v27
    %v40 = vmul.f32 %v35, %v28
    %42 = vset.pattern.permute.xlu0 0
    %43 = vperm.xlu0 %42, %v39
    %v44 = vpop.permute.xlu0 %43
    %47 = vset.pattern.permute.xlu0 0
    %48 = vperm.xlu0 %47, %v40
    %v49 = vpop.permute.xlu0 %48
    %v51 = vlaneseq
    %v52 = vshrl.u32 %v51, 7
    %v53 = vsub.s32 0, %v52
    %v54 = vrot.slane %v29, %v53
    %v55 = vmul.f32 %v44, %v54
    %v56 = vmul.f32 %v49, %v54
    %57 = vset.pattern.permute.xlu0 0
    %58 = vperm.xlu0 %57, %v25
    %v59 = vpop.permute.xlu0 %58
    %61 = vset.pattern.permute.xlu0 0
    %62 = vperm.xlu0 %61, %v26
    %v63 = vpop.permute.xlu0 %62
    %v65 = vlaneseq
    %v66 = vshrl.u32 %v65, 7
    %v67 = vsub.s32 1, %v66
    %v68 = vrot.slane %v29, %v67
    %v69 = vmul.f32 %v59, %v68
    %v70 = vmul.f32 %v63, %v68
    %v71 = vadd.f32 %v55, %v69
    %v72 = vadd.f32 %v56, %v70
    %vm73 = vcmask 1046528
    %v74 = vrot.slane %v25, 1
    %v75 = vrot.slane %v26, 1
    %v76 = vsel %vm73, %v74, %v75
    %v79 = vsel %vm73, %v75, 0.0
    %82 = vrot.lane.b32.xlu0 %v27, 127
    %v83 = vpop.permute.xlu0 %82
    %84 = vrot.lane.b32.xlu0 %v28, 127
    %v85 = vpop.permute.xlu0 %84
    %v88 = vmul.f32 %v76, %v83
    %v89 = vmul.f32 %v79, %v85
    %91 = vset.pattern.permute.xlu0 0
    %92 = vperm.xlu0 %91, %v88
    %v93 = vpop.permute.xlu0 %92
    %96 = vset.pattern.permute.xlu0 0
    %97 = vperm.xlu0 %96, %v89
    %v98 = vpop.permute.xlu0 %97
    %v100 = vlaneseq
    %v101 = vshrl.u32 %v100, 7
    %v102 = vsub.s32 2, %v101
    %v103 = vrot.slane %v29, %v102
    %v104 = vmul.f32 %v93, %v103
    %v105 = vmul.f32 %v98, %v103
    %v106 = vadd.f32 %v71, %v104
    %v107 = vadd.f32 %v72, %v105
    %v108 = vld [vmem:[#allocation2 + $0x1b8] sm:$0x1]
    %v109 = vlaneseq
    %v110 = vshrl.u32 %v109, 7
    %v111 = vsub.s32 0, %v110
    %v112 = vrot.slane %v108, %v111
    %v113 = vadd.f32 %v106, %v112
    %v114 = vadd.f32 %v107, %v112
    %v115 = vmax.f32 %v113, 0.0
    %v116 = vmax.f32 %v114, 0.0
    %v119 = vrot.slane %v115, 7
    %v120 = vrot.slane %v116, 7
    %v121 = vsel %vm32, %v119, %v120
    %v124 = vsel %vm32, 0.0, %v119
    %125 = vset.pattern.permute.xlu0 0
    %126 = vperm.xlu0 %125, %v27
    %v127 = vpop.permute.xlu0 %126
    %129 = vset.pattern.permute.xlu0 0
    %130 = vperm.xlu0 %129, %v28
    %v131 = vpop.permute.xlu0 %130
    %v133 = vmul.f32 %v124, %v127
    %v134 = vmul.f32 %v121, %v131
    %v135 = vrot.slane %v115, 1
    %v136 = vrot.slane %v116, 1
    %v137 = vsel %vm73, %v135, %v136
    %v140 = vsel %vm73, %v136, 0.0
    %141 = vset.pattern.permute.xlu0 1
    %142 = vperm.xlu0 %141, %v27
    %v143 = vpop.permute.xlu0 %142
    %145 = vset.pattern.permute.xlu0 1
    %146 = vperm.xlu0 %145, %v28
    %v147 = vpop.permute.xlu0 %146
    %v149 = vmul.f32 %v137, %v143
    %v150 = vmul.f32 %v140, %v147
    %151 = vrot.lane.b32.xlu0 %v115, 32
    %v152 = vpop.permute.xlu0 %151
    %153 = vrot.lane.b32.xlu0 %v116, 32
    %v154 = vpop.permute.xlu0 %153
    %159 = vrot.lane.b32.xlu0 %v149, 64
    %v160 = vpop.permute.xlu0 %159
    %161 = vrot.lane.b32.xlu0 %v150, 64
    %v162 = vpop.permute.xlu0 %161
    %vm165 = vcmask 261120
    %v166 = vsel %vm165, %v133, %v152
    %v167 = vsel %vm165, %v134, %v154
    %vm168 = vcmask 523264
    %v169 = vsel %vm168, %v166, %v160
    %v170 = vsel %vm168, %v167, %v162
    %v171 = vld [vmem:[#allocation2 + $0xc0] sm:$0xff]
    %v172 = vld [vmem:[#allocation2 + $0xc8] sm:$0xff]
    %v173 = vld [vmem:[#allocation2 + $0xd0] sm:$0xff]
    %v174 = vld [vmem:[#allocation2 + $0xd8] sm:$0xff]
    %v175 = vld [vmem:[#allocation2 + $0xe0] sm:$0xff]
    %v176 = vld [vmem:[#allocation2 + $0xe8] sm:$0xff]
    %v177 = vld [vmem:[#allocation2 + $0xf0] sm:$0xff]
    %v178 = vld [vmem:[#allocation2 + $0xf8] sm:$0xff]
    %v179 = vld [vmem:[#allocation2 + $0x100] sm:$0xff]
    %v180 = vld [vmem:[#allocation2 + $0x108] sm:$0xff]
    %v181 = vld [vmem:[#allocation2 + $0x110] sm:$0xff]
    %v182 = vld [vmem:[#allocation2 + $0x118] sm:$0xff]
    %v183 = vld [vmem:[#allocation2 + $0x1b9] sm:$0x1]
    %v184 = vlaneseq
    %v185 = vshrl.u32 %v184, 7
    %v186 = vsub.s32 0, %v185
    %v187 = vrot.slane %v183, %v186
    %vm188 = vcmask 785408
    %v190 = vsel %vm188, %v169, 0
    %v193 = vsel %vm188, %v170, 0
    %195 = vmatprep.subr.mxu0 0.0
    %196 = vmatpush1.msra.mxu0 0.0
    %197 = vmatprep.subr.mxu0 0.0
    %198 = vmatpush1.msra.mxu0 0.0
    %199 = vmatprep.subr.mxu0 0.0
    %200 = vmatpush1.msra.mxu0 0.0
    %201 = vmatprep.subr.mxu0 0.0
    %202 = vmatpush1.msra.mxu0 0.0
    %203 = vmatprep.subr.mxu0 0.0
    %204 = vmatpush1.msra.mxu0 %v182
    %205 = vmatprep.subr.mxu0 0.0
    %206 = vmatpush1.msra.mxu0 %v181
    %207 = vmatprep.subr.mxu0 0.0
    %208 = vmatpush1.msra.mxu0 %v180
    %209 = vmatprep.subr.mxu0 0.0
    %210 = vmatpush1.msra.mxu0 %v179
    %211 = vmatprep.subr.mxu0 0.0
    %212 = vmatpush1.msra.mxu0 %v178
    %213 = vmatprep.subr.mxu0 0.0
    %214 = vmatpush1.msra.mxu0 %v177
    %215 = vmatprep.subr.mxu0 0.0
    %216 = vmatpush1.msra.mxu0 %v176
    %217 = vmatprep.subr.mxu0 0.0
    %218 = vmatpush1.msra.mxu0 %v175
    %219 = vmatprep.subr.mxu0 0.0
    %220 = vmatpush1.msra.mxu0 %v174
    %221 = vmatprep.subr.mxu0 0.0
    %222 = vmatpush1.msra.mxu0 %v173
    %223 = vmatprep.subr.mxu0 0.0
    %224 = vmatpush1.msra.mxu0 %v172
    %225 = vmatprep.subr.mxu0 0.0
    %226 = vmatpush1.msra.mxu0 %v171
    %227 = vmatprep.subr.mxu0 0.0
    %228 = vmatpush2.msra.mxu0 0.0
    %229 = vmatprep.subr.mxu0 0.0
    %230 = vmatpush2.msra.mxu0 0.0
    %231 = vmatprep.subr.mxu0 0.0
    %232 = vmatpush2.msra.mxu0 0.0
    %233 = vmatprep.subr.mxu0 0.0
    %234 = vmatpush2.msra.mxu0 0.0
    %235 = vmatprep.subr.mxu0 0.0
    %236 = vmatpush2.msra.mxu0 0.0
    %237 = vmatprep.subr.mxu0 0.0
    %238 = vmatpush2.msra.mxu0 0.0
    %239 = vmatprep.subr.mxu0 0.0
    %240 = vmatpush2.msra.mxu0 0.0
    %241 = vmatprep.subr.mxu0 0.0
    %242 = vmatpush2.msra.mxu0 0.0
    %243 = vmatprep.subr.mxu0 0.0
    %244 = vmatpush2.msra.mxu0 0.0
    %245 = vmatprep.subr.mxu0 0.0
    %246 = vmatpush2.msra.mxu0 0.0
    %247 = vmatprep.subr.mxu0 0.0
    %248 = vmatpush2.msra.mxu0 0.0
    %249 = vmatprep.subr.mxu0 0.0
    %250 = vmatpush2.msra.mxu0 0.0
    %251 = vmatprep.subr.mxu0 0.0
    %252 = vmatpush2.msra.mxu0 0.0
    %253 = vmatprep.subr.mxu0 0.0
    %254 = vmatpush2.msra.mxu0 0.0
    %255 = vmatprep.subr.mxu0 0.0
    %256 = vmatpush2.msra.mxu0 0.0
    %257 = vmatprep.subr.mxu0 0.0
    %258 = vmatpush2.msra.mxu0 0.0
    %259 = vmatprep.mubr.f32.mxu0 0.0
    %260 = vmatmul.mubr.f32.gmra.mxu0 %v190
    %v261 = vpop.f32.mrf.mxu0
    %v262 = vadd.f32 %v187, %v261
    %v263 = vpop.f32.mrf.mxu0
    %264 = vmatprep.mubr.f32.mxu0 0.0
    %265 = vmatmul.mubr.f32.gmra.mxu0 %v193
    %v266 = vpop.f32.mrf.mxu0
    %v267 = vadd.f32 %v187, %v266
    %v268 = vpop.f32.mrf.mxu0
    %269 = vdwg.mxu0
    %v270 = vmax.f32 %v262, 0.0
    %v271 = vmax.f32 %v267, 0.0
    %v274 = vrot.slane %v270, 7
    %v275 = vrot.slane %v271, 7
    %v276 = vsel %vm32, %v274, %v275
    %v279 = vsel %vm32, 0.0, %v274
    %v280 = vmul.f32 %v279, %v127
    %v281 = vmul.f32 %v276, %v131
    %v282 = vrot.slane %v270, 1
    %v283 = vrot.slane %v271, 1
    %v284 = vsel %vm73, %v282, %v283
    %v287 = vsel %vm73, %v283, 0.0
    %v288 = vmul.f32 %v284, %v143
    %v289 = vmul.f32 %v287, %v147
    %290 = vrot.lane.b32.xlu0 %v270, 64
    %v291 = vpop.permute.xlu0 %290
    %292 = vrot.lane.b32.xlu0 %v271, 64
    %v293 = vpop.permute.xlu0 %292
    %v296 = vsel %vm168, %v280, %v291
    %v297 = vsel %vm168, %v281, %v293
    %v298 = vld [vmem:[#allocation2] sm:$0xff]
    %v299 = vld [vmem:[#allocation2 + $0x8] sm:$0xff]
    %v300 = vld [vmem:[#allocation2 + $0x10] sm:$0xff]
    %v301 = vld [vmem:[#allocation2 + $0x18] sm:$0xff]
    %v302 = vld [vmem:[#allocation2 + $0x20] sm:$0xff]
    %v303 = vld [vmem:[#allocation2 + $0x28] sm:$0xff]
    %v304 = vld [vmem:[#allocation2 + $0x30] sm:$0xff]
    %v305 = vld [vmem:[#allocation2 + $0x38] sm:$0xff]
    %v306 = vld [vmem:[#allocation2 + $0x40] sm:$0xff]
    %v307 = vld [vmem:[#allocation2 + $0x48] sm:$0xff]
    %v308 = vld [vmem:[#allocation2 + $0x50] sm:$0xff]
    %v309 = vld [vmem:[#allocation2 + $0x58] sm:$0xff]
    %v310 = vld [vmem:[#allocation2 + $0x60] sm:$0xff]
    %v311 = vld [vmem:[#allocation2 + $0x68] sm:$0xff]
    %v312 = vld [vmem:[#allocation2 + $0x70] sm:$0xff]
    %v313 = vld [vmem:[#allocation2 + $0x78] sm:$0xff]
    %v314 = vld [vmem:[#allocation2 + $0x80] sm:$0xff]
    %v315 = vld [vmem:[#allocation2 + $0x88] sm:$0xff]
    %v316 = vld [vmem:[#allocation2 + $0x90] sm:$0xff]
    %v317 = vld [vmem:[#allocation2 + $0x98] sm:$0xff]
    %v318 = vld [vmem:[#allocation2 + $0xa0] sm:$0xff]
    %v319 = vld [vmem:[#allocation2 + $0xa8] sm:$0xff]
    %v320 = vld [vmem:[#allocation2 + $0xb0] sm:$0xff]
    %v321 = vld [vmem:[#allocation2 + $0xb8] sm:$0xff]
    %v322 = vld [vmem:[#allocation2 + $0x1ba] sm:$0x1]
    %v323 = vlaneseq
    %v324 = vshrl.u32 %v323, 7
    %v325 = vsub.s32 0, %v324
    %v326 = vrot.slane %v322, %v325
    %v328 = vsel %vm168, %v288, 0
    %v331 = vsel %vm168, %v289, 0
    %333 = vmatprep.subr.mxu0 0.0
    %334 = vmatpush1.msra.mxu0 %v313
    %335 = vmatprep.subr.mxu0 0.0
    %336 = vmatpush1.msra.mxu0 %v312
    %337 = vmatprep.subr.mxu0 0.0
    %338 = vmatpush1.msra.mxu0 %v311
    %339 = vmatprep.subr.mxu0 0.0
    %340 = vmatpush1.msra.mxu0 %v310
    %341 = vmatprep.subr.mxu0 0.0
    %342 = vmatpush1.msra.mxu0 %v309
    %343 = vmatprep.subr.mxu0 0.0
    %344 = vmatpush1.msra.mxu0 %v308
    %345 = vmatprep.subr.mxu0 0.0
    %346 = vmatpush1.msra.mxu0 %v307
    %347 = vmatprep.subr.mxu0 0.0
    %348 = vmatpush1.msra.mxu0 %v306
    %349 = vmatprep.subr.mxu0 0.0
    %350 = vmatpush1.msra.mxu0 %v305
    %351 = vmatprep.subr.mxu0 0.0
    %352 = vmatpush1.msra.mxu0 %v304
    %353 = vmatprep.subr.mxu0 0.0
    %354 = vmatpush1.msra.mxu0 %v303
    %355 = vmatprep.subr.mxu0 0.0
    %356 = vmatpush1.msra.mxu0 %v302
    %357 = vmatprep.subr.mxu0 0.0
    %358 = vmatpush1.msra.mxu0 %v301
    %359 = vmatprep.subr.mxu0 0.0
    %360 = vmatpush1.msra.mxu0 %v300
    %361 = vmatprep.subr.mxu0 0.0
    %362 = vmatpush1.msra.mxu0 %v299
    %363 = vmatprep.subr.mxu0 0.0
    %364 = vmatpush1.msra.mxu0 %v298
    %365 = vmatprep.subr.mxu0 0.0
    %366 = vmatpush2.msra.mxu0 0.0
    %367 = vmatprep.subr.mxu0 0.0
    %368 = vmatpush2.msra.mxu0 0.0
    %369 = vmatprep.subr.mxu0 0.0
    %370 = vmatpush2.msra.mxu0 0.0
    %371 = vmatprep.subr.mxu0 0.0
    %372 = vmatpush2.msra.mxu0 0.0
    %373 = vmatprep.subr.mxu0 0.0
    %374 = vmatpush2.msra.mxu0 0.0
    %375 = vmatprep.subr.mxu0 0.0
    %376 = vmatpush2.msra.mxu0 0.0
    %377 = vmatprep.subr.mxu0 0.0
    %378 = vmatpush2.msra.mxu0 0.0
    %379 = vmatprep.subr.mxu0 0.0
    %380 = vmatpush2.msra.mxu0 0.0
    %381 = vmatprep.subr.mxu0 0.0
    %382 = vmatpush2.msra.mxu0 %v321
    %383 = vmatprep.subr.mxu0 0.0
    %384 = vmatpush2.msra.mxu0 %v320
    %385 = vmatprep.subr.mxu0 0.0
    %386 = vmatpush2.msra.mxu0 %v319
    %387 = vmatprep.subr.mxu0 0.0
    %388 = vmatpush2.msra.mxu0 %v318
    %389 = vmatprep.subr.mxu0 0.0
    %390 = vmatpush2.msra.mxu0 %v317
    %391 = vmatprep.subr.mxu0 0.0
    %392 = vmatpush2.msra.mxu0 %v316
    %393 = vmatprep.subr.mxu0 0.0
    %394 = vmatpush2.msra.mxu0 %v315
    %395 = vmatprep.subr.mxu0 0.0
    %396 = vmatpush2.msra.mxu0 %v314
    %397 = vmatprep.mubr.f32.mxu0 %v328
    %398 = vmatmul.mubr.f32.gmra.mxu0 %v296
    %v399 = vpop.f32.mrf.mxu0
    %v400 = vadd.f32 %v326, %v399
    %v401 = vpop.f32.mrf.mxu0
    %402 = vmatprep.mubr.f32.mxu0 %v331
    %403 = vmatmul.mubr.f32.gmra.mxu0 %v297
    %v404 = vpop.f32.mrf.mxu0
    %v405 = vadd.f32 %v326, %v404
    %v406 = vpop.f32.mrf.mxu0
    %407 = vdwg.mxu0
    %v408 = vmax.f32 %v400, 0.0
    %v409 = vmax.f32 %v405, 0.0
    %v410 = vld [vmem:[#allocation2 + $0x120] sm:$0xff]
    %v411 = vld [vmem:[#allocation2 + $0x128] sm:$0xff]
    %v412 = vld [vmem:[#allocation2 + $0x130] sm:$0xff]
    %v413 = vld [vmem:[#allocation2 + $0x138] sm:$0xff]
    %v414 = vld [vmem:[#allocation2 + $0x140] sm:$0xff]
    %v415 = vld [vmem:[#allocation2 + $0x148] sm:$0xff]
    %v416 = vld [vmem:[#allocation2 + $0x150] sm:$0xff]
    %v417 = vld [vmem:[#allocation2 + $0x158] sm:$0xff]
    %v418 = vld [vmem:[#allocation2 + $0x1bb] sm:$0x1]
    %v419 = vlaneseq
    %v420 = vshrl.u32 %v419, 7
    %v421 = vsub.s32 0, %v420
    %v422 = vrot.slane %v418, %v421
    %v424 = vsel %vm168, %v408, 0
    %v427 = vsel %vm168, %v409, 0
    %429 = vmatprep.subr.mxu0 0.0
    %430 = vmatpush1.msra.mxu0 0.0
    %431 = vmatprep.subr.mxu0 0.0
    %432 = vmatpush1.msra.mxu0 0.0
    %433 = vmatprep.subr.mxu0 0.0
    %434 = vmatpush1.msra.mxu0 0.0
    %435 = vmatprep.subr.mxu0 0.0
    %436 = vmatpush1.msra.mxu0 0.0
    %437 = vmatprep.subr.mxu0 0.0
    %438 = vmatpush1.msra.mxu0 0.0
    %439 = vmatprep.subr.mxu0 0.0
    %440 = vmatpush1.msra.mxu0 0.0
    %441 = vmatprep.subr.mxu0 0.0
    %442 = vmatpush1.msra.mxu0 0.0
    %443 = vmatprep.subr.mxu0 0.0
    %444 = vmatpush1.msra.mxu0 0.0
    %445 = vmatprep.subr.mxu0 0.0
    %446 = vmatpush1.msra.mxu0 %v417
    %447 = vmatprep.subr.mxu0 0.0
    %448 = vmatpush1.msra.mxu0 %v416
    %449 = vmatprep.subr.mxu0 0.0
    %450 = vmatpush1.msra.mxu0 %v415
    %451 = vmatprep.subr.mxu0 0.0
    %452 = vmatpush1.msra.mxu0 %v414
    %453 = vmatprep.subr.mxu0 0.0
    %454 = vmatpush1.msra.mxu0 %v413
    %455 = vmatprep.subr.mxu0 0.0
    %456 = vmatpush1.msra.mxu0 %v412
    %457 = vmatprep.subr.mxu0 0.0
    %458 = vmatpush1.msra.mxu0 %v411
    %459 = vmatprep.subr.mxu0 0.0
    %460 = vmatpush1.msra.mxu0 %v410
    %461 = vmatprep.subr.mxu0 0.0
    %462 = vmatpush2.msra.mxu0 0.0
    %463 = vmatprep.subr.mxu0 0.0
    %464 = vmatpush2.msra.mxu0 0.0
    %465 = vmatprep.subr.mxu0 0.0
    %466 = vmatpush2.msra.mxu0 0.0
    %467 = vmatprep.subr.mxu0 0.0
    %468 = vmatpush2.msra.mxu0 0.0
    %469 = vmatprep.subr.mxu0 0.0
    %470 = vmatpush2.msra.mxu0 0.0
    %471 = vmatprep.subr.mxu0 0.0
    %472 = vmatpush2.msra.mxu0 0.0
    %473 = vmatprep.subr.mxu0 0.0
    %474 = vmatpush2.msra.mxu0 0.0
    %475 = vmatprep.subr.mxu0 0.0
    %476 = vmatpush2.msra.mxu0 0.0
    %477 = vmatprep.subr.mxu0 0.0
    %478 = vmatpush2.msra.mxu0 0.0
    %479 = vmatprep.subr.mxu0 0.0
    %480 = vmatpush2.msra.mxu0 0.0
    %481 = vmatprep.subr.mxu0 0.0
    %482 = vmatpush2.msra.mxu0 0.0
    %483 = vmatprep.subr.mxu0 0.0
    %484 = vmatpush2.msra.mxu0 0.0
    %485 = vmatprep.subr.mxu0 0.0
    %486 = vmatpush2.msra.mxu0 0.0
    %487 = vmatprep.subr.mxu0 0.0
    %488 = vmatpush2.msra.mxu0 0.0
    %489 = vmatprep.subr.mxu0 0.0
    %490 = vmatpush2.msra.mxu0 0.0
    %491 = vmatprep.subr.mxu0 0.0
    %492 = vmatpush2.msra.mxu0 0.0
    %493 = vmatprep.mubr.f32.mxu0 0.0
    %494 = vmatmul.mubr.f32.gmra.mxu0 %v424
    %v495 = vpop.f32.mrf.mxu0
    %v496 = vadd.f32 %v422, %v495
    %v497 = vpop.f32.mrf.mxu0
    %498 = vmatprep.mubr.f32.mxu0 0.0
    %499 = vmatmul.mubr.f32.gmra.mxu0 %v427
    %v500 = vpop.f32.mrf.mxu0
    %v501 = vadd.f32 %v422, %v500
    %v502 = vpop.f32.mrf.mxu0
    %503 = vdwg.mxu0
    %v504 = vld [vmem:[#allocation2 + $0x160] sm:$0xff]
    %v505 = vld [vmem:[#allocation2 + $0x168] sm:$0xff]
    %v506 = vld [vmem:[#allocation2 + $0x170] sm:$0xff]
    %v507 = vld [vmem:[#allocation2 + $0x178] sm:$0xff]
    %v508 = vld [vmem:[#allocation2 + $0x180] sm:$0xff]
    %v509 = vld [vmem:[#allocation2 + $0x188] sm:$0xff]
    %v510 = vld [vmem:[#allocation2 + $0x190] sm:$0xff]
    %v511 = vld [vmem:[#allocation2 + $0x198] sm:$0xff]
    %v512 = vld [vmem:[#allocation2 + $0x1bc] sm:$0x1]
    %v513 = vlaneseq
    %v514 = vshrl.u32 %v513, 7
    %v515 = vsub.s32 0, %v514
    %v516 = vrot.slane %v512, %v515
    %517 = vmatprep.subr.mxu0 0.0
    %518 = vmatpush1.msra.mxu0 0.0
    %519 = vmatprep.subr.mxu0 0.0
    %520 = vmatpush1.msra.mxu0 0.0
    %521 = vmatprep.subr.mxu0 0.0
    %522 = vmatpush1.msra.mxu0 0.0
    %523 = vmatprep.subr.mxu0 0.0
    %524 = vmatpush1.msra.mxu0 0.0
    %525 = vmatprep.subr.mxu0 0.0
    %526 = vmatpush1.msra.mxu0 0.0
    %527 = vmatprep.subr.mxu0 0.0
    %528 = vmatpush1.msra.mxu0 0.0
    %529 = vmatprep.subr.mxu0 0.0
    %530 = vmatpush1.msra.mxu0 0.0
    %531 = vmatprep.subr.mxu0 0.0
    %532 = vmatpush1.msra.mxu0 0.0
    %533 = vmatprep.subr.mxu0 0.0
    %534 = vmatpush1.msra.mxu0 %v511
    %535 = vmatprep.subr.mxu0 0.0
    %536 = vmatpush1.msra.mxu0 %v510
    %537 = vmatprep.subr.mxu0 0.0
    %538 = vmatpush1.msra.mxu0 %v509
    %539 = vmatprep.subr.mxu0 0.0
    %540 = vmatpush1.msra.mxu0 %v508
    %541 = vmatprep.subr.mxu0 0.0
    %542 = vmatpush1.msra.mxu0 %v507
    %543 = vmatprep.subr.mxu0 0.0
    %544 = vmatpush1.msra.mxu0 %v506
    %545 = vmatprep.subr.mxu0 0.0
    %546 = vmatpush1.msra.mxu0 %v505
    %547 = vmatprep.subr.mxu0 0.0
    %548 = vmatpush1.msra.mxu0 %v504
    %549 = vmatprep.subr.mxu0 0.0
    %550 = vmatpush2.msra.mxu0 0.0
    %551 = vmatprep.subr.mxu0 0.0
    %552 = vmatpush2.msra.mxu0 0.0
    %553 = vmatprep.subr.mxu0 0.0
    %554 = vmatpush2.msra.mxu0 0.0
    %555 = vmatprep.subr.mxu0 0.0
    %556 = vmatpush2.msra.mxu0 0.0
    %557 = vmatprep.subr.mxu0 0.0
    %558 = vmatpush2.msra.mxu0 0.0
    %559 = vmatprep.subr.mxu0 0.0
    %560 = vmatpush2.msra.mxu0 0.0
    %561 = vmatprep.subr.mxu0 0.0
    %562 = vmatpush2.msra.mxu0 0.0
    %563 = vmatprep.subr.mxu0 0.0
    %564 = vmatpush2.msra.mxu0 0.0
    %565 = vmatprep.subr.mxu0 0.0
    %566 = vmatpush2.msra.mxu0 0.0
    %567 = vmatprep.subr.mxu0 0.0
    %568 = vmatpush2.msra.mxu0 0.0
    %569 = vmatprep.subr.mxu0 0.0
    %570 = vmatpush2.msra.mxu0 0.0
    %571 = vmatprep.subr.mxu0 0.0
    %572 = vmatpush2.msra.mxu0 0.0
    %573 = vmatprep.subr.mxu0 0.0
    %574 = vmatpush2.msra.mxu0 0.0
    %575 = vmatprep.subr.mxu0 0.0
    %576 = vmatpush2.msra.mxu0 0.0
    %577 = vmatprep.subr.mxu0 0.0
    %578 = vmatpush2.msra.mxu0 0.0
    %579 = vmatprep.subr.mxu0 0.0
    %580 = vmatpush2.msra.mxu0 0.0
    %581 = vmatprep.mubr.f32.mxu0 0.0
    %582 = vmatmul.mubr.f32.gmra.mxu0 %v424
    %v583 = vpop.f32.mrf.mxu0
    %v584 = vadd.f32 %v516, %v583
    %v585 = vpop.f32.mrf.mxu0
    %586 = vmatprep.mubr.f32.mxu0 0.0
    %587 = vmatmul.mubr.f32.gmra.mxu0 %v427
    %v588 = vpop.f32.mrf.mxu0
    %v589 = vadd.f32 %v516, %v588
    %v590 = vpop.f32.mrf.mxu0
    %591 = vdwg.mxu0
    %594 = vrot.lane.b32.xlu0 %v496, 112
    %v595 = vpop.permute.xlu0 %594
    %596 = vrot.lane.b32.xlu0 %v501, 112
    %v597 = vpop.permute.xlu0 %596
    %598 = vrot.lane.b32.xlu0 %v496, 96
    %v599 = vpop.permute.xlu0 %598
    %600 = vrot.lane.b32.xlu0 %v501, 96
    %v601 = vpop.permute.xlu0 %600
    %602 = vrot.lane.b32.xlu0 %v496, 80
    %v603 = vpop.permute.xlu0 %602
    %604 = vrot.lane.b32.xlu0 %v501, 80
    %v605 = vpop.permute.xlu0 %604
    %608 = vrot.lane.b32.xlu0 %v584, 112
    %v609 = vpop.permute.xlu0 %608
    %610 = vrot.lane.b32.xlu0 %v589, 112
    %v611 = vpop.permute.xlu0 %610
    %614 = vrot.lane.b32.xlu0 %v584, 96
    %v615 = vpop.permute.xlu0 %614
    %616 = vrot.lane.b32.xlu0 %v589, 96
    %v617 = vpop.permute.xlu0 %616
    %620 = vrot.lane.b32.xlu0 %v584, 80
    %v621 = vpop.permute.xlu0 %620
    %622 = vrot.lane.b32.xlu0 %v589, 80
    %v623 = vpop.permute.xlu0 %622
    %v626 = vld [vmem:[#allocation2 + $0xc0] sm:$0xff]
    %v627 = vld [vmem:[#allocation2 + $0xc8] sm:$0xff]
    %v628 = vld [vmem:[#allocation2 + $0xd0] sm:$0xff]
    %v629 = vld [vmem:[#allocation2 + $0xd8] sm:$0xff]
    %v630 = vld [vmem:[#allocation2 + $0xe0] sm:$0xff]
    %v631 = vld [vmem:[#allocation2 + $0xe8] sm:$0xff]
    %v632 = vld [vmem:[#allocation2 + $0xf0] sm:$0xff]
    %v633 = vld [vmem:[#allocation2 + $0xf8] sm:$0xff]
    %634 = vrot.lane.b32.xlu0 %v496, 64
    %v635 = vpop.permute.xlu0 %634
    %636 = vrot.lane.b32.xlu0 %v501, 64
    %v637 = vpop.permute.xlu0 %636
    %638 = vrot.lane.b32.xlu0 %v595, 64
    %v639 = vpop.permute.xlu0 %638
    %640 = vrot.lane.b32.xlu0 %v597, 64
    %v641 = vpop.permute.xlu0 %640
    %642 = vrot.lane.b32.xlu0 %v599, 64
    %v643 = vpop.permute.xlu0 %642
    %644 = vrot.lane.b32.xlu0 %v601, 64
    %v645 = vpop.permute.xlu0 %644
    %646 = vrot.lane.b32.xlu0 %v603, 64
    %v647 = vpop.permute.xlu0 %646
    %648 = vrot.lane.b32.xlu0 %v605, 64
    %v649 = vpop.permute.xlu0 %648
    %658 = vrot.lane.b32.xlu0 %v626, 64
    %v659 = vpop.permute.xlu0 %658
    %660 = vrot.lane.b32.xlu0 %v627, 64
    %v661 = vpop.permute.xlu0 %660
    %662 = vrot.lane.b32.xlu0 %v628, 64
    %v663 = vpop.permute.xlu0 %662
    %664 = vrot.lane.b32.xlu0 %v629, 64
    %v665 = vpop.permute.xlu0 %664
    %666 = vrot.lane.b32.xlu0 %v630, 64
    %v667 = vpop.permute.xlu0 %666
    %668 = vrot.lane.b32.xlu0 %v631, 64
    %v669 = vpop.permute.xlu0 %668
    %670 = vrot.lane.b32.xlu0 %v632, 64
    %v671 = vpop.permute.xlu0 %670
    %672 = vrot.lane.b32.xlu0 %v633, 64
    %v673 = vpop.permute.xlu0 %672
    %vm682 = vcmask 130048
    %v683 = vsel %vm682, %v496, 0
    %v685 = vsel %vm682, %v501, 0
    %v687 = vsel %vm682, %v595, 0
    %v689 = vsel %vm682, %v597, 0
    %v691 = vsel %vm682, %v599, 0
    %v693 = vsel %vm682, %v601, 0
    %v695 = vsel %vm682, %v603, 0
    %v697 = vsel %vm682, %v605, 0
    %v699 = vsel %vm682, %v635, 0
    %v701 = vsel %vm682, %v637, 0
    %v703 = vsel %vm682, %v639, 0
    %v705 = vsel %vm682, %v641, 0
    %v707 = vsel %vm682, %v643, 0
    %v709 = vsel %vm682, %v645, 0
    %v711 = vsel %vm682, %v647, 0
    %v713 = vsel %vm682, %v649, 0
    %715 = vmatprep.subr.mxu0 0.0
    %716 = vmatpush1.xpose.msra.mxu0 0.0
    %717 = vmatprep.subr.mxu0 0.0
    %718 = vmatpush1.xpose.msra.mxu0 0.0
    %719 = vmatprep.subr.mxu0 0.0
    %720 = vmatpush1.xpose.msra.mxu0 0.0
    %721 = vmatprep.subr.mxu0 0.0
    %722 = vmatpush1.xpose.msra.mxu0 0.0
    %723 = vmatprep.subr.mxu0 0.0
    %724 = vmatpush1.xpose.msra.mxu0 0.0
    %725 = vmatprep.subr.mxu0 0.0
    %726 = vmatpush1.xpose.msra.mxu0 0.0
    %727 = vmatprep.subr.mxu0 0.0
    %728 = vmatpush1.xpose.msra.mxu0 0.0
    %729 = vmatprep.subr.mxu0 0.0
    %730 = vmatpush1.xpose.msra.mxu0 0.0
    %731 = vmatprep.subr.mxu0 0.0
    %732 = vmatpush1.xpose.msra.mxu0 %v713
    %733 = vmatprep.subr.mxu0 0.0
    %734 = vmatpush1.xpose.msra.mxu0 %v711
    %735 = vmatprep.subr.mxu0 0.0
    %736 = vmatpush1.xpose.msra.mxu0 %v709
    %737 = vmatprep.subr.mxu0 0.0
    %738 = vmatpush1.xpose.msra.mxu0 %v707
    %739 = vmatprep.subr.mxu0 0.0
    %740 = vmatpush1.xpose.msra.mxu0 %v705
    %741 = vmatprep.subr.mxu0 0.0
    %742 = vmatpush1.xpose.msra.mxu0 %v703
    %743 = vmatprep.subr.mxu0 0.0
    %744 = vmatpush1.xpose.msra.mxu0 %v701
    %745 = vmatprep.subr.mxu0 0.0
    %746 = vmatpush1.xpose.msra.mxu0 %v699
    %747 = vmatprep.subr.mxu0 0.0
    %748 = vmatpush2.xpose.msra.mxu0 0.0
    %749 = vmatprep.subr.mxu0 0.0
    %750 = vmatpush2.xpose.msra.mxu0 0.0
    %751 = vmatprep.subr.mxu0 0.0
    %752 = vmatpush2.xpose.msra.mxu0 0.0
    %753 = vmatprep.subr.mxu0 0.0
    %754 = vmatpush2.xpose.msra.mxu0 0.0
    %755 = vmatprep.subr.mxu0 0.0
    %756 = vmatpush2.xpose.msra.mxu0 0.0
    %757 = vmatprep.subr.mxu0 0.0
    %758 = vmatpush2.xpose.msra.mxu0 0.0
    %759 = vmatprep.subr.mxu0 0.0
    %760 = vmatpush2.xpose.msra.mxu0 0.0
    %761 = vmatprep.subr.mxu0 0.0
    %762 = vmatpush2.xpose.msra.mxu0 0.0
    %763 = vmatprep.subr.mxu0 0.0
    %764 = vmatpush2.xpose.msra.mxu0 0.0
    %765 = vmatprep.subr.mxu0 0.0
    %766 = vmatpush2.xpose.msra.mxu0 0.0
    %767 = vmatprep.subr.mxu0 0.0
    %768 = vmatpush2.xpose.msra.mxu0 0.0
    %769 = vmatprep.subr.mxu0 0.0
    %770 = vmatpush2.xpose.msra.mxu0 0.0
    %771 = vmatprep.subr.mxu0 0.0
    %772 = vmatpush2.xpose.msra.mxu0 0.0
    %773 = vmatprep.subr.mxu0 0.0
    %774 = vmatpush2.xpose.msra.mxu0 0.0
    %775 = vmatprep.subr.mxu0 0.0
    %776 = vmatpush2.xpose.msra.mxu0 0.0
    %777 = vmatprep.subr.mxu0 0.0
    %778 = vmatpush2.xpose.msra.mxu0 0.0
    %779 = vmatprep.mubr.f32.mxu0 0.0
    %780 = vmatmul.mubr.f32.gmra.mxu0 %v683
    %v781 = vpop.f32.mrf.mxu0
    %v782 = vadd.f32 %v659, %v781
    %v783 = vpop.f32.mrf.mxu0
    %784 = vmatprep.mubr.f32.mxu0 0.0
    %785 = vmatmul.mubr.f32.gmra.mxu0 %v685
    %v786 = vpop.f32.mrf.mxu0
    %v787 = vadd.f32 %v661, %v786
    %v788 = vpop.f32.mrf.mxu0
    %789 = vmatprep.mubr.f32.mxu0 0.0
    %790 = vmatmul.mubr.f32.gmra.mxu0 %v687
    %v791 = vpop.f32.mrf.mxu0
    %v792 = vadd.f32 %v663, %v791
    %v793 = vpop.f32.mrf.mxu0
    %794 = vmatprep.mubr.f32.mxu0 0.0
    %795 = vmatmul.mubr.f32.gmra.mxu0 %v689
    %v796 = vpop.f32.mrf.mxu0
    %v797 = vadd.f32 %v665, %v796
    %v798 = vpop.f32.mrf.mxu0
    %799 = vmatprep.mubr.f32.mxu0 0.0
    %800 = vmatmul.mubr.f32.gmra.mxu0 %v691
    %v801 = vpop.f32.mrf.mxu0
    %v802 = vadd.f32 %v667, %v801
    %v803 = vpop.f32.mrf.mxu0
    %804 = vmatprep.mubr.f32.mxu0 0.0
    %805 = vmatmul.mubr.f32.gmra.mxu0 %v693
    %v806 = vpop.f32.mrf.mxu0
    %v807 = vadd.f32 %v669, %v806
    %v808 = vpop.f32.mrf.mxu0
    %809 = vmatprep.mubr.f32.mxu0 0.0
    %810 = vmatmul.mubr.f32.gmra.mxu0 %v695
    %v811 = vpop.f32.mrf.mxu0
    %v812 = vadd.f32 %v671, %v811
    %v813 = vpop.f32.mrf.mxu0
    %814 = vmatprep.mubr.f32.mxu0 0.0
    %815 = vmatmul.mubr.f32.gmra.mxu0 %v697
    %v816 = vpop.f32.mrf.mxu0
    %v817 = vadd.f32 %v673, %v816
    %v818 = vpop.f32.mrf.mxu0
    %819 = vdwg.mxu0
    %v820 = vsel %vm168, %v782, -inf
    %821 = vmax.xlane.f32.xlu0 %v820
    %v822 = vpop.xlane.xlu0 %821
    %v823 = vsel %vm168, %v787, -inf
    %824 = vmax.xlane.f32.xlu0 %v823
    %v825 = vpop.xlane.xlu0 %824
    %v826 = vsel %vm168, %v792, -inf
    %827 = vmax.xlane.f32.xlu0 %v826
    %v828 = vpop.xlane.xlu0 %827
    %v829 = vsel %vm168, %v797, -inf
    %830 = vmax.xlane.f32.xlu0 %v829
    %v831 = vpop.xlane.xlu0 %830
    %v832 = vsel %vm168, %v802, -inf
    %833 = vmax.xlane.f32.xlu0 %v832
    %v834 = vpop.xlane.xlu0 %833
    %v835 = vsel %vm168, %v807, -inf
    %836 = vmax.xlane.f32.xlu0 %v835
    %v837 = vpop.xlane.xlu0 %836
    %v838 = vsel %vm168, %v812, -inf
    %839 = vmax.xlane.f32.xlu0 %v838
    %v840 = vpop.xlane.xlu0 %839
    %v841 = vsel %vm168, %v817, -inf
    %842 = vmax.xlane.f32.xlu0 %v841
    %v843 = vpop.xlane.xlu0 %842
    %v844 = vsub.f32 %v782, %v822
    %v845 = vsub.f32 %v787, %v825
    %v846 = vsub.f32 %v792, %v828
    %v847 = vsub.f32 %v797, %v831
    %v848 = vsub.f32 %v802, %v834
    %v849 = vsub.f32 %v807, %v837
    %v850 = vsub.f32 %v812, %v840
    %v851 = vsub.f32 %v817, %v843
    %v852 = vmul.f32 %v844, 1.442695
    %v853 = vpow.pop %v852
    %v854 = vmul.f32 %v845, 1.442695
    %v855 = vpow.pop %v854
    %v856 = vmul.f32 %v846, 1.442695
    %v857 = vpow.pop %v856
    %v858 = vmul.f32 %v847, 1.442695
    %v859 = vpow.pop %v858
    %v860 = vmul.f32 %v848, 1.442695
    %v861 = vpow.pop %v860
    %v862 = vmul.f32 %v849, 1.442695
    %v863 = vpow.pop %v862
    %v864 = vmul.f32 %v850, 1.442695
    %v865 = vpow.pop %v864
    %v866 = vmul.f32 %v851, 1.442695
    %v867 = vpow.pop %v866
    %v868 = vsel %vm168, %v853, 0.0
    %869 = vadd.xlane.f32.xlu0 %v868
    %v870 = vpop.xlane.xlu0 %869
    %v871 = vsel %vm168, %v855, 0.0
    %872 = vadd.xlane.f32.xlu0 %v871
    %v873 = vpop.xlane.xlu0 %872
    %v874 = vsel %vm168, %v857, 0.0
    %875 = vadd.xlane.f32.xlu0 %v874
    %v876 = vpop.xlane.xlu0 %875
    %v877 = vsel %vm168, %v859, 0.0
    %878 = vadd.xlane.f32.xlu0 %v877
    %v879 = vpop.xlane.xlu0 %878
    %v880 = vsel %vm168, %v861, 0.0
    %881 = vadd.xlane.f32.xlu0 %v880
    %v882 = vpop.xlane.xlu0 %881
    %v883 = vsel %vm168, %v863, 0.0
    %884 = vadd.xlane.f32.xlu0 %v883
    %v885 = vpop.xlane.xlu0 %884
    %v886 = vsel %vm168, %v865, 0.0
    %887 = vadd.xlane.f32.xlu0 %v886
    %v888 = vpop.xlane.xlu0 %887
    %v889 = vsel %vm168, %v867, 0.0
    %890 = vadd.xlane.f32.xlu0 %v889
    %v891 = vpop.xlane.xlu0 %890
    %v892 = vrcp.pop %v870
    %v893 = vrcp.pop %v873
    %v894 = vrcp.pop %v876
    %v895 = vrcp.pop %v879
    %v896 = vrcp.pop %v882
    %v897 = vrcp.pop %v885
    %v898 = vrcp.pop %v888
    %v899 = vrcp.pop %v891
    %v900 = vmul.f32 %v853, %v892
    %v901 = vmul.f32 %v855, %v893
    %v902 = vmul.f32 %v857, %v894
    %v903 = vmul.f32 %v859, %v895
    %v904 = vmul.f32 %v861, %v896
    %v905 = vmul.f32 %v863, %v897
    %v906 = vmul.f32 %v865, %v898
    %v907 = vmul.f32 %v867, %v899
    %v909 = vsel %vm168, %v900, 0
    %v912 = vsel %vm168, %v901, 0
    %v915 = vsel %vm168, %v902, 0
    %v918 = vsel %vm168, %v903, 0
    %v921 = vsel %vm168, %v904, 0
    %v924 = vsel %vm168, %v905, 0
    %v927 = vsel %vm168, %v906, 0
    %v930 = vsel %vm168, %v907, 0
    %932 = vmatprep.subr.mxu0 0.0
    %933 = vmatpush1.msra.mxu0 0.0
    %934 = vmatprep.subr.mxu0 0.0
    %935 = vmatpush1.msra.mxu0 0.0
    %936 = vmatprep.subr.mxu0 0.0
    %937 = vmatpush1.msra.mxu0 0.0
    %938 = vmatprep.subr.mxu0 0.0
    %939 = vmatpush1.msra.mxu0 0.0
    %940 = vmatprep.subr.mxu0 0.0
    %941 = vmatpush1.msra.mxu0 0.0
    %942 = vmatprep.subr.mxu0 0.0
    %943 = vmatpush1.msra.mxu0 0.0
    %944 = vmatprep.subr.mxu0 0.0
    %945 = vmatpush1.msra.mxu0 0.0
    %946 = vmatprep.subr.mxu0 0.0
    %947 = vmatpush1.msra.mxu0 0.0
    %948 = vmatprep.subr.mxu0 0.0
    %949 = vmatpush1.msra.mxu0 %v623
    %950 = vmatprep.subr.mxu0 0.0
    %951 = vmatpush1.msra.mxu0 %v621
    %952 = vmatprep.subr.mxu0 0.0
    %953 = vmatpush1.msra.mxu0 %v617
    %954 = vmatprep.subr.mxu0 0.0
    %955 = vmatpush1.msra.mxu0 %v615
    %956 = vmatprep.subr.mxu0 0.0
    %957 = vmatpush1.msra.mxu0 %v611
    %958 = vmatprep.subr.mxu0 0.0
    %959 = vmatpush1.msra.mxu0 %v609
    %960 = vmatprep.subr.mxu0 0.0
    %961 = vmatpush1.msra.mxu0 %v589
    %962 = vmatprep.subr.mxu0 0.0
    %963 = vmatpush1.msra.mxu0 %v584
    %964 = vmatprep.subr.mxu0 0.0
    %965 = vmatpush2.msra.mxu0 0.0
    %966 = vmatprep.subr.mxu0 0.0
    %967 = vmatpush2.msra.mxu0 0.0
    %968 = vmatprep.subr.mxu0 0.0
    %969 = vmatpush2.msra.mxu0 0.0
    %970 = vmatprep.subr.mxu0 0.0
    %971 = vmatpush2.msra.mxu0 0.0
    %972 = vmatprep.subr.mxu0 0.0
    %973 = vmatpush2.msra.mxu0 0.0
    %974 = vmatprep.subr.mxu0 0.0
    %975 = vmatpush2.msra.mxu0 0.0
    %976 = vmatprep.subr.mxu0 0.0
    %977 = vmatpush2.msra.mxu0 0.0
    %978 = vmatprep.subr.mxu0 0.0
    %979 = vmatpush2.msra.mxu0 0.0
    %980 = vmatprep.subr.mxu0 0.0
    %981 = vmatpush2.msra.mxu0 0.0
    %982 = vmatprep.subr.mxu0 0.0
    %983 = vmatpush2.msra.mxu0 0.0
    %984 = vmatprep.subr.mxu0 0.0
    %985 = vmatpush2.msra.mxu0 0.0
    %986 = vmatprep.subr.mxu0 0.0
    %987 = vmatpush2.msra.mxu0 0.0
    %988 = vmatprep.subr.mxu0 0.0
    %989 = vmatpush2.msra.mxu0 0.0
    %990 = vmatprep.subr.mxu0 0.0
    %991 = vmatpush2.msra.mxu0 0.0
    %992 = vmatprep.subr.mxu0 0.0
    %993 = vmatpush2.msra.mxu0 0.0
    %994 = vmatprep.subr.mxu0 0.0
    %995 = vmatpush2.msra.mxu0 0.0
    %996 = vmatprep.mubr.f32.mxu0 0.0
    %997 = vmatmul.mubr.f32.gmra.mxu0 %v909
    %v998 = vpop.f32.mrf.mxu0
    %v999 = vadd.f32 0.0, %v998
    %v1000 = vpop.f32.mrf.mxu0
    %1001 = vmatprep.mubr.f32.mxu0 0.0
    %1002 = vmatmul.mubr.f32.gmra.mxu0 %v912
    %v1003 = vpop.f32.mrf.mxu0
    %v1004 = vadd.f32 0.0, %v1003
    %v1005 = vpop.f32.mrf.mxu0
    %1006 = vmatprep.mubr.f32.mxu0 0.0
    %1007 = vmatmul.mubr.f32.gmra.mxu0 %v915
    %v1008 = vpop.f32.mrf.mxu0
    %v1009 = vadd.f32 0.0, %v1008
    %v1010 = vpop.f32.mrf.mxu0
    %1011 = vmatprep.mubr.f32.mxu0 0.0
    %1012 = vmatmul.mubr.f32.gmra.mxu0 %v918
    %v1013 = vpop.f32.mrf.mxu0
    %v1014 = vadd.f32 0.0, %v1013
    %v1015 = vpop.f32.mrf.mxu0
    %1016 = vmatprep.mubr.f32.mxu0 0.0
    %1017 = vmatmul.mubr.f32.gmra.mxu0 %v921
    %v1018 = vpop.f32.mrf.mxu0
    %v1019 = vadd.f32 0.0, %v1018
    %v1020 = vpop.f32.mrf.mxu0
    %1021 = vmatprep.mubr.f32.mxu0 0.0
    %1022 = vmatmul.mubr.f32.gmra.mxu0 %v924
    %v1023 = vpop.f32.mrf.mxu0
    %v1024 = vadd.f32 0.0, %v1023
    %v1025 = vpop.f32.mrf.mxu0
    %1026 = vmatprep.mubr.f32.mxu0 0.0
    %1027 = vmatmul.mubr.f32.gmra.mxu0 %v927
    %v1028 = vpop.f32.mrf.mxu0
    %v1029 = vadd.f32 0.0, %v1028
    %v1030 = vpop.f32.mrf.mxu0
    %1031 = vmatprep.mubr.f32.mxu0 0.0
    %1032 = vmatmul.mubr.f32.gmra.mxu0 %v930
    %v1033 = vpop.f32.mrf.mxu0
    %v1034 = vadd.f32 0.0, %v1033
    %v1035 = vpop.f32.mrf.mxu0
    %1036 = vdwg.mxu0
    %1039 = vrot.lane.b32.xlu0 %v1009, 16
    %v1040 = vpop.permute.xlu0 %1039
    %1041 = vrot.lane.b32.xlu0 %v1014, 16
    %v1042 = vpop.permute.xlu0 %1041
    %1047 = vrot.lane.b32.xlu0 %v1019, 32
    %v1048 = vpop.permute.xlu0 %1047
    %1049 = vrot.lane.b32.xlu0 %v1024, 32
    %v1050 = vpop.permute.xlu0 %1049
    %1055 = vrot.lane.b32.xlu0 %v1029, 48
    %v1056 = vpop.permute.xlu0 %1055
    %1057 = vrot.lane.b32.xlu0 %v1034, 48
    %v1058 = vpop.permute.xlu0 %1057
    %v1061 = vsel %vm682, %v999, %v1040
    %v1062 = vsel %vm682, %v1004, %v1042
    %v1063 = vsel %vm165, %v1061, %v1048
    %v1064 = vsel %vm165, %v1062, %v1050
    %vm1065 = vcmask 392192
    %v1066 = vsel %vm1065, %v1063, %v1056
    %v1067 = vsel %vm1065, %v1064, %v1058
    %v1068 = vld [vmem:[#allocation2 + $0x1bd] sm:$0x1]
    %v1069 = vlaneseq
    %v1070 = vshrl.u32 %v1069, 7
    %v1071 = vsub.s32 0, %v1070
    %v1072 = vrot.slane %v1068, %v1071
    %1081 = vrot.lane.b32.xlu0 %v314, 64
    %v1082 = vpop.permute.xlu0 %1081
    %1083 = vrot.lane.b32.xlu0 %v315, 64
    %v1084 = vpop.permute.xlu0 %1083
    %1085 = vrot.lane.b32.xlu0 %v316, 64
    %v1086 = vpop.permute.xlu0 %1085
    %1087 = vrot.lane.b32.xlu0 %v317, 64
    %v1088 = vpop.permute.xlu0 %1087
    %1089 = vrot.lane.b32.xlu0 %v318, 64
    %v1090 = vpop.permute.xlu0 %1089
    %1091 = vrot.lane.b32.xlu0 %v319, 64
    %v1092 = vpop.permute.xlu0 %1091
    %1093 = vrot.lane.b32.xlu0 %v320, 64
    %v1094 = vpop.permute.xlu0 %1093
    %1095 = vrot.lane.b32.xlu0 %v321, 64
    %v1096 = vpop.permute.xlu0 %1095
    %v1106 = vsel %vm168, %v1066, 0
    %v1109 = vsel %vm168, %v1067, 0
    %1111 = vmatprep.subr.mxu0 0.0
    %1112 = vmatpush1.msra.mxu0 0.0
    %1113 = vmatprep.subr.mxu0 0.0
    %1114 = vmatpush1.msra.mxu0 0.0
    %1115 = vmatprep.subr.mxu0 0.0
    %1116 = vmatpush1.msra.mxu0 0.0
    %1117 = vmatprep.subr.mxu0 0.0
    %1118 = vmatpush1.msra.mxu0 0.0
    %1119 = vmatprep.subr.mxu0 0.0
    %1120 = vmatpush1.msra.mxu0 0.0
    %1121 = vmatprep.subr.mxu0 0.0
    %1122 = vmatpush1.msra.mxu0 0.0
    %1123 = vmatprep.subr.mxu0 0.0
    %1124 = vmatpush1.msra.mxu0 0.0
    %1125 = vmatprep.subr.mxu0 0.0
    %1126 = vmatpush1.msra.mxu0 0.0
    %1127 = vmatprep.subr.mxu0 0.0
    %1128 = vmatpush1.msra.mxu0 %v1096
    %1129 = vmatprep.subr.mxu0 0.0
    %1130 = vmatpush1.msra.mxu0 %v1094
    %1131 = vmatprep.subr.mxu0 0.0
    %1132 = vmatpush1.msra.mxu0 %v1092
    %1133 = vmatprep.subr.mxu0 0.0
    %1134 = vmatpush1.msra.mxu0 %v1090
    %1135 = vmatprep.subr.mxu0 0.0
    %1136 = vmatpush1.msra.mxu0 %v1088
    %1137 = vmatprep.subr.mxu0 0.0
    %1138 = vmatpush1.msra.mxu0 %v1086
    %1139 = vmatprep.subr.mxu0 0.0
    %1140 = vmatpush1.msra.mxu0 %v1084
    %1141 = vmatprep.subr.mxu0 0.0
    %1142 = vmatpush1.msra.mxu0 %v1082
    %1143 = vmatprep.subr.mxu0 0.0
    %1144 = vmatpush2.msra.mxu0 0.0
    %1145 = vmatprep.subr.mxu0 0.0
    %1146 = vmatpush2.msra.mxu0 0.0
    %1147 = vmatprep.subr.mxu0 0.0
    %1148 = vmatpush2.msra.mxu0 0.0
    %1149 = vmatprep.subr.mxu0 0.0
    %1150 = vmatpush2.msra.mxu0 0.0
    %1151 = vmatprep.subr.mxu0 0.0
    %1152 = vmatpush2.msra.mxu0 0.0
    %1153 = vmatprep.subr.mxu0 0.0
    %1154 = vmatpush2.msra.mxu0 0.0
    %1155 = vmatprep.subr.mxu0 0.0
    %1156 = vmatpush2.msra.mxu0 0.0
    %1157 = vmatprep.subr.mxu0 0.0
    %1158 = vmatpush2.msra.mxu0 0.0
    %1159 = vmatprep.subr.mxu0 0.0
    %1160 = vmatpush2.msra.mxu0 0.0
    %1161 = vmatprep.subr.mxu0 0.0
    %1162 = vmatpush2.msra.mxu0 0.0
    %1163 = vmatprep.subr.mxu0 0.0
    %1164 = vmatpush2.msra.mxu0 0.0
    %1165 = vmatprep.subr.mxu0 0.0
    %1166 = vmatpush2.msra.mxu0 0.0
    %1167 = vmatprep.subr.mxu0 0.0
    %1168 = vmatpush2.msra.mxu0 0.0
    %1169 = vmatprep.subr.mxu0 0.0
    %1170 = vmatpush2.msra.mxu0 0.0
    %1171 = vmatprep.subr.mxu0 0.0
    %1172 = vmatpush2.msra.mxu0 0.0
    %1173 = vmatprep.subr.mxu0 0.0
    %1174 = vmatpush2.msra.mxu0 0.0
    %1175 = vmatprep.mubr.f32.mxu0 0.0
    %1176 = vmatmul.mubr.f32.gmra.mxu0 %v1106
    %v1177 = vpop.f32.mrf.mxu0
    %v1178 = vadd.f32 %v1072, %v1177
    %v1179 = vpop.f32.mrf.mxu0
    %1180 = vmatprep.mubr.f32.mxu0 0.0
    %1181 = vmatmul.mubr.f32.gmra.mxu0 %v1109
    %v1182 = vpop.f32.mrf.mxu0
    %v1183 = vadd.f32 %v1072, %v1182
    %v1184 = vpop.f32.mrf.mxu0
    %1185 = vdwg.mxu0
    %v1186 = vsel %vm168, %v1178, -inf
    %v1187 = vrot.slane %v1186, 4
    %v1188 = vmax.f32 %v1186, %v1187
    %v1189 = vrot.slane %v1188, 2
    %v1190 = vmax.f32 %v1188, %v1189
    %v1191 = vrot.slane %v1190, 1
    %v1192 = vmax.f32 %v1190, %v1191
    %v1193 = vsel %vm168, %v1183, -inf
    %v1194 = vrot.slane %v1193, 4
    %v1195 = vmax.f32 %v1193, %v1194
    %v1196 = vrot.slane %v1195, 2
    %v1197 = vmax.f32 %v1195, %v1196
    %v1198 = vrot.slane %v1197, 1
    %v1199 = vmax.f32 %v1197, %v1198
    %v1200 = vld [vmem:[#allocation2 + $0x1be] sm:$0x1]
    %v1201 = vlaneseq
    %v1202 = vshrl.u32 %v1201, 7
    %v1203 = vsub.s32 0, %v1202
    %v1204 = vrot.slane %v1200, %v1203
    %vm1207 = vcmask 1041409
    %v1208 = vsel %vm1207, %v1199, %v1192
    %1217 = vrot.lane.b32.xlu0 %v504, 64
    %v1218 = vpop.permute.xlu0 %1217
    %1219 = vrot.lane.b32.xlu0 %v505, 64
    %v1220 = vpop.permute.xlu0 %1219
    %1221 = vrot.lane.b32.xlu0 %v506, 64
    %v1222 = vpop.permute.xlu0 %1221
    %1223 = vrot.lane.b32.xlu0 %v507, 64
    %v1224 = vpop.permute.xlu0 %1223
    %1225 = vrot.lane.b32.xlu0 %v508, 64
    %v1226 = vpop.permute.xlu0 %1225
    %1227 = vrot.lane.b32.xlu0 %v509, 64
    %v1228 = vpop.permute.xlu0 %1227
    %1229 = vrot.lane.b32.xlu0 %v510, 64
    %v1230 = vpop.permute.xlu0 %1229
    %1231 = vrot.lane.b32.xlu0 %v511, 64
    %v1232 = vpop.permute.xlu0 %1231
    %v1241 = vsel %vm168, %v1208, 0
    %1243 = vmatprep.subr.mxu0 0.0
    %1244 = vmatpush1.msra.mxu0 0.0
    %1245 = vmatprep.subr.mxu0 0.0
    %1246 = vmatpush1.msra.mxu0 0.0
    %1247 = vmatprep.subr.mxu0 0.0
    %1248 = vmatpush1.msra.mxu0 0.0
    %1249 = vmatprep.subr.mxu0 0.0
    %1250 = vmatpush1.msra.mxu0 0.0
    %1251 = vmatprep.subr.mxu0 0.0
    %1252 = vmatpush1.msra.mxu0 0.0
    %1253 = vmatprep.subr.mxu0 0.0
    %1254 = vmatpush1.msra.mxu0 0.0
    %1255 = vmatprep.subr.mxu0 0.0
    %1256 = vmatpush1.msra.mxu0 0.0
    %1257 = vmatprep.subr.mxu0 0.0
    %1258 = vmatpush1.msra.mxu0 0.0
    %1259 = vmatprep.subr.mxu0 0.0
    %1260 = vmatpush1.msra.mxu0 %v1232
    %1261 = vmatprep.subr.mxu0 0.0
    %1262 = vmatpush1.msra.mxu0 %v1230
    %1263 = vmatprep.subr.mxu0 0.0
    %1264 = vmatpush1.msra.mxu0 %v1228
    %1265 = vmatprep.subr.mxu0 0.0
    %1266 = vmatpush1.msra.mxu0 %v1226
    %1267 = vmatprep.subr.mxu0 0.0
    %1268 = vmatpush1.msra.mxu0 %v1224
    %1269 = vmatprep.subr.mxu0 0.0
    %1270 = vmatpush1.msra.mxu0 %v1222
    %1271 = vmatprep.subr.mxu0 0.0
    %1272 = vmatpush1.msra.mxu0 %v1220
    %1273 = vmatprep.subr.mxu0 0.0
    %1274 = vmatpush1.msra.mxu0 %v1218
    %1275 = vmatprep.subr.mxu0 0.0
    %1276 = vmatpush2.msra.mxu0 0.0
    %1277 = vmatprep.subr.mxu0 0.0
    %1278 = vmatpush2.msra.mxu0 0.0
    %1279 = vmatprep.subr.mxu0 0.0
    %1280 = vmatpush2.msra.mxu0 0.0
    %1281 = vmatprep.subr.mxu0 0.0
    %1282 = vmatpush2.msra.mxu0 0.0
    %1283 = vmatprep.subr.mxu0 0.0
    %1284 = vmatpush2.msra.mxu0 0.0
    %1285 = vmatprep.subr.mxu0 0.0
    %1286 = vmatpush2.msra.mxu0 0.0
    %1287 = vmatprep.subr.mxu0 0.0
    %1288 = vmatpush2.msra.mxu0 0.0
    %1289 = vmatprep.subr.mxu0 0.0
    %1290 = vmatpush2.msra.mxu0 0.0
    %1291 = vmatprep.subr.mxu0 0.0
    %1292 = vmatpush2.msra.mxu0 0.0
    %1293 = vmatprep.subr.mxu0 0.0
    %1294 = vmatpush2.msra.mxu0 0.0
    %1295 = vmatprep.subr.mxu0 0.0
    %1296 = vmatpush2.msra.mxu0 0.0
    %1297 = vmatprep.subr.mxu0 0.0
    %1298 = vmatpush2.msra.mxu0 0.0
    %1299 = vmatprep.subr.mxu0 0.0
    %1300 = vmatpush2.msra.mxu0 0.0
    %1301 = vmatprep.subr.mxu0 0.0
    %1302 = vmatpush2.msra.mxu0 0.0
    %1303 = vmatprep.subr.mxu0 0.0
    %1304 = vmatpush2.msra.mxu0 0.0
    %1305 = vmatprep.subr.mxu0 0.0
    %1306 = vmatpush2.msra.mxu0 0.0
    %1307 = vmatprep.mubr.f32.mxu0 0.0
    %1308 = vmatmul.mubr.f32.gmra.mxu0 %v1241
    %v1309 = vpop.f32.mrf.mxu0
    %v1310 = vadd.f32 %v1204, %v1309
    %v1311 = vpop.f32.mrf.mxu0
    %1312 = vdwg.mxu0
    %v1313 = vmul.f32 %v1310, 0.5
    %v1314 = vmul.f32 %v1313, 1.442695
    %v1315 = vpow.pop %v1314
    %1317 = vrot.lane.b32.xlu0 %v1315, 48
    %v1318 = vpop.permute.xlu0 %1317
    %v1320 = vmul.f32 %v25, %v1318
    %1322 = vrot.lane.b32.xlu0 %v1320, 64
    %v1323 = vpop.permute.xlu0 %1322
    %v1325 = vadd.f32 %v1310, %v1323
    %v1326 = vadd.f32 %v1310, 1.0
    %v1327 = vmul.f32 %v1310, %v1310
    %1329 = vrot.lane.b32.xlu0 %v1327, 16
    %v1330 = vpop.permute.xlu0 %1329
    %v1332 = vsub.f32 %v1326, %v1330
    %v1333 = vmul.f32 %v1315, %v1315
    %v1334 = vsub.f32 %v1332, %v1333
    %1336 = vrot.lane.b32.xlu0 %v1334, 112
    %v1337 = vpop.permute.xlu0 %1336
    %vm1339 = vcmask 123904
    %v1340 = vsel %vm1339, %v1337, 0.0
    %1341 = vadd.xlane.f32.xlu0 %v1340
    %v1342 = vpop.xlane.xlu0 %1341
    %v1343 = vmul.f32 %v1342, -0.5
    %v1344 = vld [vmem:[#allocation2 + $0x1a0] sm:$0xff]
    %v1345 = vld [vmem:[#allocation2 + $0x1a8] sm:$0xff]
    %v1346 = vld [vmem:[#allocation2 + $0x1bf] sm:$0x1]
    %v1347 = vlaneseq
    %v1348 = vshrl.u32 %v1347, 7
    %v1349 = vsub.s32 0, %v1348
    %v1350 = vrot.slane %v1346, %v1349
    %v1352 = vsel %vm682, %v1325, 0
    %1354 = vmatprep.subr.mxu0 0.0
    %1355 = vmatpush1.msra.mxu0 0.0
    %1356 = vmatprep.subr.mxu0 0.0
    %1357 = vmatpush1.msra.mxu0 0.0
    %1358 = vmatprep.subr.mxu0 0.0
    %1359 = vmatpush1.msra.mxu0 0.0
    %1360 = vmatprep.subr.mxu0 0.0
    %1361 = vmatpush1.msra.mxu0 0.0
    %1362 = vmatprep.subr.mxu0 0.0
    %1363 = vmatpush1.msra.mxu0 0.0
    %1364 = vmatprep.subr.mxu0 0.0
    %1365 = vmatpush1.msra.mxu0 0.0
    %1366 = vmatprep.subr.mxu0 0.0
    %1367 = vmatpush1.msra.mxu0 0.0
    %1368 = vmatprep.subr.mxu0 0.0
    %1369 = vmatpush1.msra.mxu0 0.0
    %1370 = vmatprep.subr.mxu0 0.0
    %1371 = vmatpush1.msra.mxu0 0.0
    %1372 = vmatprep.subr.mxu0 0.0
    %1373 = vmatpush1.msra.mxu0 0.0
    %1374 = vmatprep.subr.mxu0 0.0
    %1375 = vmatpush1.msra.mxu0 0.0
    %1376 = vmatprep.subr.mxu0 0.0
    %1377 = vmatpush1.msra.mxu0 0.0
    %1378 = vmatprep.subr.mxu0 0.0
    %1379 = vmatpush1.msra.mxu0 0.0
    %1380 = vmatprep.subr.mxu0 0.0
    %1381 = vmatpush1.msra.mxu0 0.0
    %1382 = vmatprep.subr.mxu0 0.0
    %1383 = vmatpush1.msra.mxu0 %v1345
    %1384 = vmatprep.subr.mxu0 0.0
    %1385 = vmatpush1.msra.mxu0 %v1344
    %1386 = vmatprep.subr.mxu0 0.0
    %1387 = vmatpush2.msra.mxu0 0.0
    %1388 = vmatprep.subr.mxu0 0.0
    %1389 = vmatpush2.msra.mxu0 0.0
    %1390 = vmatprep.subr.mxu0 0.0
    %1391 = vmatpush2.msra.mxu0 0.0
    %1392 = vmatprep.subr.mxu0 0.0
    %1393 = vmatpush2.msra.mxu0 0.0
    %1394 = vmatprep.subr.mxu0 0.0
    %1395 = vmatpush2.msra.mxu0 0.0
    %1396 = vmatprep.subr.mxu0 0.0
    %1397 = vmatpush2.msra.mxu0 0.0
    %1398 = vmatprep.subr.mxu0 0.0
    %1399 = vmatpush2.msra.mxu0 0.0
    %1400 = vmatprep.subr.mxu0 0.0
    %1401 = vmatpush2.msra.mxu0 0.0
    %1402 = vmatprep.subr.mxu0 0.0
    %1403 = vmatpush2.msra.mxu0 0.0
    %1404 = vmatprep.subr.mxu0 0.0
    %1405 = vmatpush2.msra.mxu0 0.0
    %1406 = vmatprep.subr.mxu0 0.0
    %1407 = vmatpush2.msra.mxu0 0.0
    %1408 = vmatprep.subr.mxu0 0.0
    %1409 = vmatpush2.msra.mxu0 0.0
    %1410 = vmatprep.subr.mxu0 0.0
    %1411 = vmatpush2.msra.mxu0 0.0
    %1412 = vmatprep.subr.mxu0 0.0
    %1413 = vmatpush2.msra.mxu0 0.0
    %1414 = vmatprep.subr.mxu0 0.0
    %1415 = vmatpush2.msra.mxu0 0.0
    %1416 = vmatprep.subr.mxu0 0.0
    %1417 = vmatpush2.msra.mxu0 0.0
    %1418 = vmatprep.mubr.f32.mxu0 0.0
    %1419 = vmatmul.mubr.f32.gmra.mxu0 %v1352
    %v1420 = vpop.f32.mrf.mxu0
    %v1421 = vadd.f32 %v1350, %v1420
    %v1422 = vpop.f32.mrf.mxu0
    %1423 = vdwg.mxu0
    %v1424 = vmax.f32 %v1421, 0.0
    %v1425 = vld [vmem:[#allocation2] sm:$0xff]
    %v1426 = vld [vmem:[#allocation2 + $0x8] sm:$0xff]
    %v1427 = vld [vmem:[#allocation2 + $0x10] sm:$0xff]
    %v1428 = vld [vmem:[#allocation2 + $0x18] sm:$0xff]
    %v1429 = vld [vmem:[#allocation2 + $0x20] sm:$0xff]
    %v1430 = vld [vmem:[#allocation2 + $0x28] sm:$0xff]
    %v1431 = vld [vmem:[#allocation2 + $0x30] sm:$0xff]
    %v1432 = vld [vmem:[#allocation2 + $0x38] sm:$0xff]
    %v1433 = vld [vmem:[#allocation2 + $0x40] sm:$0xff]
    %v1434 = vld [vmem:[#allocation2 + $0x48] sm:$0xff]
    %v1435 = vld [vmem:[#allocation2 + $0x50] sm:$0xff]
    %v1436 = vld [vmem:[#allocation2 + $0x58] sm:$0xff]
    %v1437 = vld [vmem:[#allocation2 + $0x60] sm:$0xff]
    %v1438 = vld [vmem:[#allocation2 + $0x68] sm:$0xff]
    %v1439 = vld [vmem:[#allocation2 + $0x70] sm:$0xff]
    %v1440 = vld [vmem:[#allocation2 + $0x78] sm:$0xff]
    %v1441 = vld [vmem:[#allocation2 + $0x1c0] sm:$0x1]
    %v1442 = vlaneseq
    %v1443 = vshrl.u32 %v1442, 7
    %v1444 = vsub.s32 0, %v1443
    %v1445 = vrot.slane %v1441, %v1444
    %1462 = vrot.lane.b32.xlu0 %v1425, 64
    %v1463 = vpop.permute.xlu0 %1462
    %1464 = vrot.lane.b32.xlu0 %v1426, 64
    %v1465 = vpop.permute.xlu0 %1464
    %1466 = vrot.lane.b32.xlu0 %v1427, 64
    %v1467 = vpop.permute.xlu0 %1466
    %1468 = vrot.lane.b32.xlu0 %v1428, 64
    %v1469 = vpop.permute.xlu0 %1468
    %1470 = vrot.lane.b32.xlu0 %v1429, 64
    %v1471 = vpop.permute.xlu0 %1470
    %1472 = vrot.lane.b32.xlu0 %v1430, 64
    %v1473 = vpop.permute.xlu0 %1472
    %1474 = vrot.lane.b32.xlu0 %v1431, 64
    %v1475 = vpop.permute.xlu0 %1474
    %1476 = vrot.lane.b32.xlu0 %v1432, 64
    %v1477 = vpop.permute.xlu0 %1476
    %1478 = vrot.lane.b32.xlu0 %v1433, 64
    %v1479 = vpop.permute.xlu0 %1478
    %1480 = vrot.lane.b32.xlu0 %v1434, 64
    %v1481 = vpop.permute.xlu0 %1480
    %1482 = vrot.lane.b32.xlu0 %v1435, 64
    %v1483 = vpop.permute.xlu0 %1482
    %1484 = vrot.lane.b32.xlu0 %v1436, 64
    %v1485 = vpop.permute.xlu0 %1484
    %1486 = vrot.lane.b32.xlu0 %v1437, 64
    %v1487 = vpop.permute.xlu0 %1486
    %1488 = vrot.lane.b32.xlu0 %v1438, 64
    %v1489 = vpop.permute.xlu0 %1488
    %1490 = vrot.lane.b32.xlu0 %v1439, 64
    %v1491 = vpop.permute.xlu0 %1490
    %1492 = vrot.lane.b32.xlu0 %v1440, 64
    %v1493 = vpop.permute.xlu0 %1492
    %1510 = vmatprep.subr.mxu0 0.0
    %1511 = vmatpush1.msra.mxu0 %v1493
    %1512 = vmatprep.subr.mxu0 0.0
    %1513 = vmatpush1.msra.mxu0 %v1491
    %1514 = vmatprep.subr.mxu0 0.0
    %1515 = vmatpush1.msra.mxu0 %v1489
    %1516 = vmatprep.subr.mxu0 0.0
    %1517 = vmatpush1.msra.mxu0 %v1487
    %1518 = vmatprep.subr.mxu0 0.0
    %1519 = vmatpush1.msra.mxu0 %v1485
    %1520 = vmatprep.subr.mxu0 0.0
    %1521 = vmatpush1.msra.mxu0 %v1483
    %1522 = vmatprep.subr.mxu0 0.0
    %1523 = vmatpush1.msra.mxu0 %v1481
    %1524 = vmatprep.subr.mxu0 0.0
    %1525 = vmatpush1.msra.mxu0 %v1479
    %1526 = vmatprep.subr.mxu0 0.0
    %1527 = vmatpush1.msra.mxu0 %v1477
    %1528 = vmatprep.subr.mxu0 0.0
    %1529 = vmatpush1.msra.mxu0 %v1475
    %1530 = vmatprep.subr.mxu0 0.0
    %1531 = vmatpush1.msra.mxu0 %v1473
    %1532 = vmatprep.subr.mxu0 0.0
    %1533 = vmatpush1.msra.mxu0 %v1471
    %1534 = vmatprep.subr.mxu0 0.0
    %1535 = vmatpush1.msra.mxu0 %v1469
    %1536 = vmatprep.subr.mxu0 0.0
    %1537 = vmatpush1.msra.mxu0 %v1467
    %1538 = vmatprep.subr.mxu0 0.0
    %1539 = vmatpush1.msra.mxu0 %v1465
    %1540 = vmatprep.subr.mxu0 0.0
    %1541 = vmatpush1.msra.mxu0 %v1463
    %1542 = vmatprep.subr.mxu0 0.0
    %1543 = vmatpush2.msra.mxu0 0.0
    %1544 = vmatprep.subr.mxu0 0.0
    %1545 = vmatpush2.msra.mxu0 0.0
    %1546 = vmatprep.subr.mxu0 0.0
    %1547 = vmatpush2.msra.mxu0 0.0
    %1548 = vmatprep.subr.mxu0 0.0
    %1549 = vmatpush2.msra.mxu0 0.0
    %1550 = vmatprep.subr.mxu0 0.0
    %1551 = vmatpush2.msra.mxu0 0.0
    %1552 = vmatprep.subr.mxu0 0.0
    %1553 = vmatpush2.msra.mxu0 0.0
    %1554 = vmatprep.subr.mxu0 0.0
    %1555 = vmatpush2.msra.mxu0 0.0
    %1556 = vmatprep.subr.mxu0 0.0
    %1557 = vmatpush2.msra.mxu0 0.0
    %1558 = vmatprep.subr.mxu0 0.0
    %1559 = vmatpush2.msra.mxu0 0.0
    %1560 = vmatprep.subr.mxu0 0.0
    %1561 = vmatpush2.msra.mxu0 0.0
    %1562 = vmatprep.subr.mxu0 0.0
    %1563 = vmatpush2.msra.mxu0 0.0
    %1564 = vmatprep.subr.mxu0 0.0
    %1565 = vmatpush2.msra.mxu0 0.0
    %1566 = vmatprep.subr.mxu0 0.0
    %1567 = vmatpush2.msra.mxu0 0.0
    %1568 = vmatprep.subr.mxu0 0.0
    %1569 = vmatpush2.msra.mxu0 0.0
    %1570 = vmatprep.subr.mxu0 0.0
    %1571 = vmatpush2.msra.mxu0 0.0
    %1572 = vmatprep.subr.mxu0 0.0
    %1573 = vmatpush2.msra.mxu0 0.0
    %1574 = vmatprep.mubr.f32.mxu0 0.0
    %1575 = vmatmul.mubr.f32.gmra.mxu0 %v1424
    %v1576 = vpop.f32.mrf.mxu0
    %v1577 = vadd.f32 %v1445, %v1576
    %v1578 = vpop.f32.mrf.mxu0
    %1579 = vdwg.mxu0
    %v1580 = vmax.f32 %v1577, 0.0
    %v1581 = vld [vmem:[#allocation2 + $0x1c1] sm:$0x1]
    %v1582 = vlaneseq
    %v1583 = vshrl.u32 %v1582, 7
    %v1584 = vsub.s32 0, %v1583
    %v1585 = vrot.slane %v1581, %v1584
    %1586 = vrot.lane.b32.xlu0 %v504, 32
    %v1587 = vpop.permute.xlu0 %1586
    %1588 = vrot.lane.b32.xlu0 %v505, 32
    %v1589 = vpop.permute.xlu0 %1588
    %1590 = vrot.lane.b32.xlu0 %v506, 32
    %v1591 = vpop.permute.xlu0 %1590
    %1592 = vrot.lane.b32.xlu0 %v507, 32
    %v1593 = vpop.permute.xlu0 %1592
    %1594 = vrot.lane.b32.xlu0 %v508, 32
    %v1595 = vpop.permute.xlu0 %1594
    %1596 = vrot.lane.b32.xlu0 %v509, 32
    %v1597 = vpop.permute.xlu0 %1596
    %1598 = vrot.lane.b32.xlu0 %v510, 32
    %v1599 = vpop.permute.xlu0 %1598
    %1600 = vrot.lane.b32.xlu0 %v511, 32
    %v1601 = vpop.permute.xlu0 %1600
    %v1611 = vsel %vm168, %v1580, 0
    %1613 = vmatprep.subr.mxu0 0.0
    %1614 = vmatpush1.msra.mxu0 0.0
    %1615 = vmatprep.subr.mxu0 0.0
    %1616 = vmatpush1.msra.mxu0 0.0
    %1617 = vmatprep.subr.mxu0 0.0
    %1618 = vmatpush1.msra.mxu0 0.0
    %1619 = vmatprep.subr.mxu0 0.0
    %1620 = vmatpush1.msra.mxu0 0.0
    %1621 = vmatprep.subr.mxu0 0.0
    %1622 = vmatpush1.msra.mxu0 0.0
    %1623 = vmatprep.subr.mxu0 0.0
    %1624 = vmatpush1.msra.mxu0 0.0
    %1625 = vmatprep.subr.mxu0 0.0
    %1626 = vmatpush1.msra.mxu0 0.0
    %1627 = vmatprep.subr.mxu0 0.0
    %1628 = vmatpush1.msra.mxu0 0.0
    %1629 = vmatprep.subr.mxu0 0.0
    %1630 = vmatpush1.msra.mxu0 %v1601
    %1631 = vmatprep.subr.mxu0 0.0
    %1632 = vmatpush1.msra.mxu0 %v1599
    %1633 = vmatprep.subr.mxu0 0.0
    %1634 = vmatpush1.msra.mxu0 %v1597
    %1635 = vmatprep.subr.mxu0 0.0
    %1636 = vmatpush1.msra.mxu0 %v1595
    %1637 = vmatprep.subr.mxu0 0.0
    %1638 = vmatpush1.msra.mxu0 %v1593
    %1639 = vmatprep.subr.mxu0 0.0
    %1640 = vmatpush1.msra.mxu0 %v1591
    %1641 = vmatprep.subr.mxu0 0.0
    %1642 = vmatpush1.msra.mxu0 %v1589
    %1643 = vmatprep.subr.mxu0 0.0
    %1644 = vmatpush1.msra.mxu0 %v1587
    %1645 = vmatprep.subr.mxu0 0.0
    %1646 = vmatpush2.msra.mxu0 0.0
    %1647 = vmatprep.subr.mxu0 0.0
    %1648 = vmatpush2.msra.mxu0 0.0
    %1649 = vmatprep.subr.mxu0 0.0
    %1650 = vmatpush2.msra.mxu0 0.0
    %1651 = vmatprep.subr.mxu0 0.0
    %1652 = vmatpush2.msra.mxu0 0.0
    %1653 = vmatprep.subr.mxu0 0.0
    %1654 = vmatpush2.msra.mxu0 0.0
    %1655 = vmatprep.subr.mxu0 0.0
    %1656 = vmatpush2.msra.mxu0 0.0
    %1657 = vmatprep.subr.mxu0 0.0
    %1658 = vmatpush2.msra.mxu0 0.0
    %1659 = vmatprep.subr.mxu0 0.0
    %1660 = vmatpush2.msra.mxu0 0.0
    %1661 = vmatprep.subr.mxu0 0.0
    %1662 = vmatpush2.msra.mxu0 0.0
    %1663 = vmatprep.subr.mxu0 0.0
    %1664 = vmatpush2.msra.mxu0 0.0
    %1665 = vmatprep.subr.mxu0 0.0
    %1666 = vmatpush2.msra.mxu0 0.0
    %1667 = vmatprep.subr.mxu0 0.0
    %1668 = vmatpush2.msra.mxu0 0.0
    %1669 = vmatprep.subr.mxu0 0.0
    %1670 = vmatpush2.msra.mxu0 0.0
    %1671 = vmatprep.subr.mxu0 0.0
    %1672 = vmatpush2.msra.mxu0 0.0
    %1673 = vmatprep.subr.mxu0 0.0
    %1674 = vmatpush2.msra.mxu0 0.0
    %1675 = vmatprep.subr.mxu0 0.0
    %1676 = vmatpush2.msra.mxu0 0.0
    %1677 = vmatprep.mubr.f32.mxu0 0.0
    %1678 = vmatmul.mubr.f32.gmra.mxu0 %v1611
    %v1679 = vpop.f32.mrf.mxu0
    %v1680 = vadd.f32 %v1585, %v1679
    %v1681 = vpop.f32.mrf.mxu0
    %1682 = vdwg.mxu0
    %v1683 = vsub.f32 0.0, %v1680
    %v1684 = vmul.f32 %v1683, 1.442695
    %v1685 = vpow.pop %v1684
    %v1686 = vadd.f32 %v1685, 1.0
    %v1687 = vrcp.pop %v1686
    %v1688 = vmul.f32 1.0, %v1687
    %1689 = vrot.lane.b32.xlu0 %v1325, 8
    %v1690 = vpop.permute.xlu0 %1689
    %1693 = vrot.lane.b32.xlu0 %v1310, 24
    %v1694 = vpop.permute.xlu0 %1693
    %vm1696 = vcmask 64512
    %v1697 = vsel %vm1696, %v1688, %v1690
    %vm1698 = vcmask 195584
    %v1699 = vsel %vm1698, %v1697, %v1694
    %vm1700 = vcmask 457728
    %v1701 = vsel %vm1700, %v1699, %v1343
    %vm1702 = vcmask 465920
    %v1703 = vsel %vm1702, %v1701, 0.0
    %1704 = vst [vmem:[%s2] sm:$0x3] %v1703
    // Predicated region
    $region14: #{prob_autoencoder_forward.1} parent=1 // pred_check
      _
    $region15: #{prob_autoencoder_forward.1} parent=1 // pred_check_branch
      %1706 = sbr.rel (0) target = $region17
    $region16: #{prob_autoencoder_forward.1} parent=1 // pred_region
      _
    $region17: #{prob_autoencoder_forward.1} parent=1 // pred_fallthru
      _
    // Predicated region
    $region18: #{prob_autoencoder_forward.1} parent=1 // pred_check
      _
    $region19: #{prob_autoencoder_forward.1} parent=1 // pred_check_branch
      %1708 = sbr.rel (0) target = $region21
    $region20: #{prob_autoencoder_forward.1} parent=1 // pred_region
      _
    $region21: #{prob_autoencoder_forward.1} parent=1 // pred_fallthru
      _
    %1709 = vsyncpa [#allocation3], 1

</llo_original>
